<compile_context>
chip_gen: v7x
topology: tpu7x:2x2x1
jax: 0.10.0
libtpu: 0.0.40
codegen_flags: <defaults>
</compile_context>

<pallas_src>
import functools
import math

import jax
import jax.numpy as jnp
from jax import lax
from jax.experimental import pallas as pl
from jax.experimental.pallas import tpu as pltpu


# --------------------------- budgets & tile picking ---------------------------

def _vmem_budget_bytes():
    """Generation-aware VMEM budget (per TensorCore)."""
    cap = 64 * 1024 * 1024  # conservative fallback (v7x per-TC size)
    try:
        cap = int(pltpu.get_tpu_info().vmem_capacity_bytes)
    except Exception:
        pass
    # leave headroom for Mosaic internal scratch; 128 MiB -> 96 MiB, 64 -> 48.
    return min((cap * 3) // 4, 100 * 1024 * 1024)


def _pick_tile(n, target, multiple):
    """Largest divisor of n that is <= target and a multiple of `multiple`.
    Returns n itself when n <= target (full-dim block is always legal)."""
    if n <= target:
        return n
    start = target - (target % multiple)
    for t in range(start, multiple - 1, -multiple):
        if n % t == 0:
            return t
    # TODO(synk): pad n_ctx to the next multiple instead of erroring.
    raise ValueError(
        f"n_ctx={n} has no tile <= {target} that is a multiple of {multiple}")


def _weights_resident(nbytes, vmem_limit):
    # Default pipelining may double-buffer even a constant-index block; keep
    # at least half the budget free for activation tiles and scratch.
    return 2 * nbytes <= vmem_limit // 2


# ----------------------------- kernel 1: QKV ---------------------------------

def _qkv_kernel(x_ref, w_ref, b_ref, q_ref, k_ref, v_ref, *, attn_ch, resident_w):
    # x_ref: (1, TM, width); w_ref: (heads, width, 3*attn_ch) resident bf16
    #        (or (1, width, 3*attn_ch) streamed); b_ref: (heads, 1, 3*attn_ch) f32
    h = pl.program_id(2)
    x = x_ref[0].astype(jnp.bfloat16)                      # bf16 MXU operand
    w = w_ref[h] if resident_w else w_ref[0]               # already bf16
    y = jnp.dot(x, w, preferred_element_type=jnp.float32)  # (TM, 3*attn_ch) f32
    y = y + b_ref[h]                                       # f32 bias
    q_ref[0, 0] = y[:, 0 * attn_ch:1 * attn_ch].astype(q_ref.dtype)
    k_ref[0, 0] = y[:, 1 * attn_ch:2 * attn_ch].astype(k_ref.dtype)
    v_ref[0, 0] = y[:, 2 * attn_ch:3 * attn_ch].astype(v_ref.dtype)


def qkv_proj_pallas(x, w_heads, b_heads, heads, attn_ch, *, tm, vmem_limit):
    """x:(bs,n_ctx,width) -> q,k,v each (bs,heads,n_ctx,attn_ch) in bf16."""
    bs, n_ctx, width = x.shape
    n_mt = n_ctx // tm

    w_bytes = w_heads.size * w_heads.dtype.itemsize
    resident = _weights_resident(w_bytes, vmem_limit)
    if resident:
        # constant block index -> fetched from HBM once, stays VMEM-resident
        w_spec = pl.BlockSpec((heads, width, 3 * attn_ch), lambda b, m, h: (0, 0, 0))
    else:
        w_spec = pl.BlockSpec((1, width, 3 * attn_ch), lambda b, m, h: (h, 0, 0))
    b_spec = pl.BlockSpec((heads, 1, 3 * attn_ch), lambda b, m, h: (0, 0, 0))

    kern = functools.partial(_qkv_kernel, attn_ch=attn_ch, resident_w=resident)
    qkv_shape = jax.ShapeDtypeStruct((bs, heads, n_ctx, attn_ch), jnp.bfloat16)
    out_spec = pl.BlockSpec((1, 1, tm, attn_ch), lambda b, m, h: (b, h, m, 0))
    return pl.pallas_call(
        kern,
        out_shape=(qkv_shape, qkv_shape, qkv_shape),
        grid_spec=pltpu.PrefetchScalarGridSpec(
            num_scalar_prefetch=0,
            grid=(bs, n_mt, heads),            # heads innermost -> x block reused
            in_specs=[
                pl.BlockSpec((1, tm, width), lambda b, m, h: (b, m, 0)),
                w_spec,
                b_spec,
            ],
            out_specs=[out_spec, out_spec, out_spec],
        ),
        compiler_params=pltpu.CompilerParams(
            dimension_semantics=("parallel", "parallel", "parallel"),
            vmem_limit_bytes=vmem_limit),
    )(x, w_heads, b_heads)


# ------------------------- kernel 2: flash attention -------------------------

def _flash_kernel(q_ref, k_ref, v_ref, o_ref, m_sc, l_sc, acc_sc):
    ki = pl.program_id(3)

    @pl.when(ki == 0)
    def _():
        m_sc[...] = jnp.full_like(m_sc, -jnp.inf)
        l_sc[...] = jnp.zeros_like(l_sc)
        acc_sc[...] = jnp.zeros_like(acc_sc)

    # softmax scale is pre-folded into the q projection weights (wrapper)
    q = q_ref[0, 0]                                    # bf16
    k = k_ref[0, 0]                                    # bf16
    # s = q @ k.T without materializing a transpose (contract last dims)
    s = lax.dot_general(q, k, dimension_numbers=(((1,), (1,)), ((), ())),
                        preferred_element_type=jnp.float32)   # (TQ, TKV) f32

    m_prev = m_sc[...]
    m_new = jnp.maximum(m_prev, s.max(axis=-1, keepdims=True))
    alpha = jnp.exp(m_prev - m_new)
    p = jnp.exp(s - m_new)
    l_sc[...] = alpha * l_sc[...] + p.sum(axis=-1, keepdims=True)
    acc_sc[...] = alpha * acc_sc[...] + jnp.dot(
        p.astype(v_ref.dtype), v_ref[0, 0], preferred_element_type=jnp.float32)
    m_sc[...] = m_new

    @pl.when(ki == pl.num_programs(3) - 1)
    def _():
        inv_l = pl.reciprocal(l_sc[...], approx=True)
        o_ref[0, 0] = (acc_sc[...] * inv_l).astype(o_ref.dtype)


def flash_attention_pallas(q, k, v, *, tq, tkv, vmem_limit):
    """q,k,v: (bs, heads, n_ctx, attn_ch) -> (bs, heads, n_ctx, attn_ch) bf16."""
    bs, heads, n_ctx, attn_ch = q.shape
    q_spec = pl.BlockSpec((1, 1, tq, attn_ch), lambda b, h, qi, ki: (b, h, qi, 0))
    # NOTE: if the trace shows exposed K/V DMA on the ki axis, add
    # pipeline_mode=pl.Buffered(3) here (VMEM headroom is ample).
    kv_spec = pl.BlockSpec((1, 1, tkv, attn_ch), lambda b, h, qi, ki: (b, h, ki, 0))
    return pl.pallas_call(
        _flash_kernel,
        out_shape=jax.ShapeDtypeStruct((bs, heads, n_ctx, attn_ch), q.dtype),
        grid_spec=pltpu.PrefetchScalarGridSpec(
            num_scalar_prefetch=0,
            grid=(bs, heads, n_ctx // tq, n_ctx // tkv),
            in_specs=[q_spec, kv_spec, kv_spec],
            out_specs=q_spec,
            scratch_shapes=[
                pltpu.VMEM((tq, 1), jnp.float32),        # running max m
                pltpu.VMEM((tq, 1), jnp.float32),        # running denom l
                pltpu.VMEM((tq, attn_ch), jnp.float32),  # accumulator
            ]),
        compiler_params=pltpu.CompilerParams(
            dimension_semantics=("parallel", "parallel", "parallel", "arbitrary"),
            vmem_limit_bytes=vmem_limit),
    )(q, k, v)


# --------------------- kernel 3: out proj + head reduction -------------------

def _proj_kernel(a_ref, w_ref, b_ref, o_ref, acc_ref, *, resident_w):
    h = pl.program_id(2)

    @pl.when(h == 0)
    def _():
        acc_ref[...] = jnp.broadcast_to(b_ref[...], acc_ref.shape)

    a = a_ref[0, 0].astype(jnp.bfloat16)
    w = w_ref[h] if resident_w else w_ref[0]           # bf16
    acc_ref[...] += jnp.dot(a, w, preferred_element_type=jnp.float32)

    @pl.when(h == pl.num_programs(2) - 1)
    def _():
        o_ref[0] = acc_ref[...].astype(o_ref.dtype)


def out_proj_pallas(attn, w_heads, bias, *, tm, out_dtype, vmem_limit):
    """attn:(bs,heads,n_ctx,attn_ch) -> (bs,n_ctx,width) lane-dense output."""
    bs, heads, n_ctx, attn_ch = attn.shape
    width = w_heads.shape[-1]
    n_mt = n_ctx // tm

    w_bytes = w_heads.size * w_heads.dtype.itemsize
    resident = _weights_resident(w_bytes, vmem_limit)
    if resident:
        w_spec = pl.BlockSpec((heads, attn_ch, width), lambda b, m, h: (0, 0, 0))
    else:
        w_spec = pl.BlockSpec((1, attn_ch, width), lambda b, m, h: (h, 0, 0))

    kern = functools.partial(_proj_kernel, resident_w=resident)
    # TODO(synk): optionally fuse this head-reduction into the flash epilogue to
    # skip the HBM round trip of the (bs, heads, n_ctx, attn_ch) intermediate.
    return pl.pallas_call(
        kern,
        out_shape=jax.ShapeDtypeStruct((bs, n_ctx, width), out_dtype),
        grid_spec=pltpu.PrefetchScalarGridSpec(
            num_scalar_prefetch=0,
            grid=(bs, n_mt, heads),              # heads innermost = reduction axis
            in_specs=[
                pl.BlockSpec((1, 1, tm, attn_ch), lambda b, m, h: (b, h, m, 0)),
                w_spec,
                pl.BlockSpec((1, width), lambda b, m, h: (0, 0)),
            ],
            out_specs=pl.BlockSpec((1, tm, width), lambda b, m, h: (b, m, 0)),
            scratch_shapes=[pltpu.VMEM((tm, width), jnp.float32)]),
        compiler_params=pltpu.CompilerParams(
            dimension_semantics=("parallel", "parallel", "arbitrary"),
            vmem_limit_bytes=vmem_limit),
    )(attn, w_heads, bias)


# --------------------------- one-time weight prep -----------------------------

def prepare_params(params, heads, compute_dtype=jnp.bfloat16):
    """Hoisted, pay-once weight re-layout + softmax-scale folding + bf16 cast.

    c_qkv columns are packed [head][q|k|v][attn_ch]; c_proj input rows are
    packed [head][attn_ch].  The softmax scale (scale*scale = 1/sqrt(attn_ch))
    is folded into the q columns of w_qkv / b_qkv so the flash kernel has no
    per-step scale multiply.
    """
    width = params["w_qkv"].shape[0]
    attn_ch = width // heads
    scale = 1.0 / math.sqrt(math.sqrt(attn_ch))
    sm_scale = scale * scale

    col_scale = jnp.concatenate([
        jnp.full((attn_ch,), sm_scale, jnp.float32),
        jnp.ones((2 * attn_ch,), jnp.float32),
    ])

    w_qkv_h = params["w_qkv"].reshape(width, heads, 3 * attn_ch).transpose(1, 0, 2)
    w_qkv_h = (w_qkv_h.astype(jnp.float32) * col_scale).astype(compute_dtype)
    b_qkv_h = (params["b_qkv"].reshape(heads, 1, 3 * attn_ch).astype(jnp.float32)
               * col_scale)
    w_proj_h = params["w_proj"].reshape(heads, attn_ch, width).astype(compute_dtype)
    b_proj = params["b_proj"].reshape(1, width).astype(jnp.float32)

    return {"w_qkv_h": w_qkv_h, "b_qkv_h": b_qkv_h,
            "w_proj_h": w_proj_h, "b_proj": b_proj}


# ------------------------------ full forward ---------------------------------

def multihead_attention(x, prep, heads, *, m_tile=256, q_tile=512, kv_tile=512):
    """Forward of MultiheadAttention.  x: (bs, n_ctx, width)."""
    bs, n_ctx, width = x.shape
    attn_ch = width // heads

    # bf16 activations: sublane-friendly tiles (mult of 16); tkv is the lane dim
    # of the (tq, tkv) score tile -> multiple of 128 when tiling.
    tm = _pick_tile(n_ctx, m_tile, 16)
    tq = _pick_tile(n_ctx, q_tile, 16)
    tkv = _pick_tile(n_ctx, kv_tile, 128)

    vmem_limit = _vmem_budget_bytes()

    q, k, v = qkv_proj_pallas(x, prep["w_qkv_h"], prep["b_qkv_h"],
                              heads, attn_ch, tm=tm, vmem_limit=vmem_limit)
    attn = flash_attention_pallas(q, k, v, tq=tq, tkv=tkv, vmem_limit=vmem_limit)
    return out_proj_pallas(attn, prep["w_proj_h"], prep["b_proj"],
                           tm=tm, out_dtype=x.dtype, vmem_limit=vmem_limit)


# ------------------------------- reference -----------------------------------

def reference_forward(x, params, heads):
    bs, n_ctx, width = x.shape
    attn_ch = width // heads
    scale = 1.0 / math.sqrt(math.sqrt(attn_ch))
    qkv = jnp.einsum("btd,de->bte", x, params["w_qkv"]) + params["b_qkv"]
    qkv = qkv.reshape(bs, n_ctx, heads, 3 * attn_ch)
    q, k, v = jnp.split(qkv, 3, axis=-1)
    w = jnp.einsum("bthc,bshc->bhts", q * scale, k * scale)
    w = jax.nn.softmax(w.astype(jnp.float32), axis=-1).astype(w.dtype)
    o = jnp.einsum("bhts,bshc->bthc", w, v).reshape(bs, n_ctx, width)
    return jnp.einsum("btd,de->bte", o, params["w_proj"]) + params["b_proj"]


# --------------------------------- main ---------------------------------------

if __name__ == "__main__":
    bs, n_ctx, width, heads = 2, 8, 32, 4
    init_scale = 0.02
    dtype = jnp.float32

    key = jax.random.PRNGKey(0)
    kx, kqkv, kproj = jax.random.split(key, 3)

    # nn.Linear weights are (out, in); store transposed (in, out) for x @ W.
    w_qkv_t = jax.random.normal(kqkv, (3 * width, width), dtype) * init_scale
    w_proj_t = jax.random.normal(kproj, (width, width), dtype) * init_scale
    params = {
        "w_qkv": w_qkv_t.T,                      # (width, 3*width)
        "b_qkv": jnp.zeros((3 * width,), dtype),
        "w_proj": w_proj_t.T,                    # (width, width)
        "b_proj": jnp.zeros((width,), dtype),
    }

    x = jax.random.normal(kx, (bs, n_ctx, width), dtype)

    # One-time weight re-layout (hoisted out of the per-call path).
    prep = prepare_params(params, heads)

    fwd = jax.jit(functools.partial(multihead_attention, heads=heads))
    out = jax.block_until_ready(fwd(x, prep))

    ref = reference_forward(x, params, heads)
    assert out.shape == (bs, n_ctx, width)
    # bf16 MXU operands + bf16 q/k/v storage + approx reciprocal -> small
    # deviations from the f32 reference; comfortably within 3e-3.
    err = float(jnp.max(jnp.abs(out - ref)))
    assert jnp.allclose(out, ref, atol=3e-3, rtol=3e-3), err

    print("KERNEL_OK")
</pallas_src>

<mosaic_0001>
module attributes {stable_mosaic.version = 11 : i64} {
  func.func @_qkv_kernel(%arg0: i32, %arg1: i32, %arg2: i32, %arg3: memref<1x8x32xf32, #tpu.memory_space<vmem>>, %arg4: memref<4x32x24xbf16, #tpu.memory_space<vmem>>, %arg5: memref<4x1x24xf32, #tpu.memory_space<vmem>>, %arg6: memref<1x1x8x8xbf16, #tpu.memory_space<vmem>>, %arg7: memref<1x1x8x8xbf16, #tpu.memory_space<vmem>>, %arg8: memref<1x1x8x8xbf16, #tpu.memory_space<vmem>>) attributes {dimension_semantics = [#tpu.dimension_semantics<parallel>, #tpu.dimension_semantics<parallel>, #tpu.dimension_semantics<parallel>], iteration_bounds = array<i64: 2, 1, 4>, scalar_prefetch = 0 : i64, scratch_operands = 0 : i64, tpu.core_type = #tpu.core_type<tc>, window_params = [{transform_indices = @transform_0, window_bounds = array<i64: 1, 8, 32>}, {pipeline_mode = #tpu.pipeline_mode<synchronous>, transform_indices = @transform_1, window_bounds = array<i64: 4, 32, 24>}, {pipeline_mode = #tpu.pipeline_mode<synchronous>, transform_indices = @transform_2, window_bounds = array<i64: 4, 1, 24>}, {transform_indices = @transform_3, window_bounds = array<i64: 1, 1, 8, 8>}, {transform_indices = @transform_4, window_bounds = array<i64: 1, 1, 8, 8>}, {transform_indices = @transform_5, window_bounds = array<i64: 1, 1, 8, 8>}]} {
    %c0 = arith.constant 0 : index
    %c0_0 = arith.constant 0 : index
    %c0_1 = arith.constant 0 : index
    %0 = vector.load %arg3[%c0, %c0_0, %c0_1] : memref<1x8x32xf32, #tpu.memory_space<vmem>>, vector<1x8x32xf32>
    %1 = vector.shape_cast %0 : vector<1x8x32xf32> to vector<8x32xf32>
    %2 = arith.truncf %1 : vector<8x32xf32> to vector<8x32xbf16>
    %3 = arith.index_cast %arg2 : i32 to index
    %c0_2 = arith.constant 0 : index
    %c0_3 = arith.constant 0 : index
    %4 = vector.load %arg4[%3, %c0_2, %c0_3] : memref<4x32x24xbf16, #tpu.memory_space<vmem>>, vector<1x32x24xbf16>
    %5 = vector.shape_cast %4 : vector<1x32x24xbf16> to vector<32x24xbf16>
    %cst = arith.constant dense<0.000000e+00> : vector<8x24xf32>
    %6 = tpu.matmul %2, %5, %cst {dimension_numbers = #tpu.dot_dimension_numbers<[1], [0], [0], [1], [0, 0, 1, 1], [], []>} : vector<8x32xbf16>, vector<32x24xbf16>, vector<8x24xf32> -> vector<8x24xf32>
    %7 = arith.index_cast %arg2 : i32 to index
    %c0_4 = arith.constant 0 : index
    %c0_5 = arith.constant 0 : index
    %8 = vector.load %arg5[%7, %c0_4, %c0_5] : memref<4x1x24xf32, #tpu.memory_space<vmem>>, vector<1x1x24xf32>
    %9 = vector.shape_cast %8 : vector<1x1x24xf32> to vector<1x24xf32>
    %10 = vector.broadcast %9 : vector<1x24xf32> to vector<8x24xf32>
    %11 = arith.addf %6, %10 : vector<8x24xf32>
    %12 = vector.extract_strided_slice %11 {offsets = [0, 0], sizes = [8, 8], strides = [1, 1]} : vector<8x24xf32> to vector<8x8xf32>
    %13 = arith.truncf %12 : vector<8x8xf32> to vector<8x8xbf16>
    %c0_6 = arith.constant 0 : index
    %c0_7 = arith.constant 0 : index
    %c0_8 = arith.constant 0 : index
    %c0_9 = arith.constant 0 : index
    %14 = vector.load %arg6[%c0_6, %c0_7, %c0_8, %c0_9] : memref<1x1x8x8xbf16, #tpu.memory_space<vmem>>, vector<1x1x8x8xbf16>
    %15 = vector.shape_cast %14 : vector<1x1x8x8xbf16> to vector<8x8xbf16>
    %16 = vector.shape_cast %13 : vector<8x8xbf16> to vector<1x1x8x8xbf16>
    tpu.vector_store %arg6[%c0_6, %c0_7, %c0_8, %c0_9], %16 {strides = array<i32>} : memref<1x1x8x8xbf16, #tpu.memory_space<vmem>>, vector<1x1x8x8xbf16>,
    %17 = vector.extract_strided_slice %11 {offsets = [0, 8], sizes = [8, 8], strides = [1, 1]} : vector<8x24xf32> to vector<8x8xf32>
    %18 = arith.truncf %17 : vector<8x8xf32> to vector<8x8xbf16>
    %c0_10 = arith.constant 0 : index
    %c0_11 = arith.constant 0 : index
    %c0_12 = arith.constant 0 : index
    %c0_13 = arith.constant 0 : index
    %19 = vector.load %arg7[%c0_10, %c0_11, %c0_12, %c0_13] : memref<1x1x8x8xbf16, #tpu.memory_space<vmem>>, vector<1x1x8x8xbf16>
    %20 = vector.shape_cast %19 : vector<1x1x8x8xbf16> to vector<8x8xbf16>
    %21 = vector.shape_cast %18 : vector<8x8xbf16> to vector<1x1x8x8xbf16>
    tpu.vector_store %arg7[%c0_10, %c0_11, %c0_12, %c0_13], %21 {strides = array<i32>} : memref<1x1x8x8xbf16, #tpu.memory_space<vmem>>, vector<1x1x8x8xbf16>,
    %22 = vector.extract_strided_slice %11 {offsets = [0, 16], sizes = [8, 8], strides = [1, 1]} : vector<8x24xf32> to vector<8x8xf32>
    %23 = arith.truncf %22 : vector<8x8xf32> to vector<8x8xbf16>
    %c0_14 = arith.constant 0 : index
    %c0_15 = arith.constant 0 : index
    %c0_16 = arith.constant 0 : index
    %c0_17 = arith.constant 0 : index
    %24 = vector.load %arg8[%c0_14, %c0_15, %c0_16, %c0_17] : memref<1x1x8x8xbf16, #tpu.memory_space<vmem>>, vector<1x1x8x8xbf16>
    %25 = vector.shape_cast %24 : vector<1x1x8x8xbf16> to vector<8x8xbf16>
    %26 = vector.shape_cast %23 : vector<8x8xbf16> to vector<1x1x8x8xbf16>
    tpu.vector_store %arg8[%c0_14, %c0_15, %c0_16, %c0_17], %26 {strides = array<i32>} : memref<1x1x8x8xbf16, #tpu.memory_space<vmem>>, vector<1x1x8x8xbf16>,
    return
  }
  func.func @transform_0(%arg0: i32, %arg1: i32, %arg2: i32) -> (i32, i32, i32) {
    %c0_i32 = arith.constant 0 : i32
    %c0_i32_0 = arith.constant 0 : i32
    return %arg0, %arg1, %c0_i32 : i32, i32, i32
  }
  func.func @transform_1(%arg0: i32, %arg1: i32, %arg2: i32) -> (i32, i32, i32) {
    %c0_i32 = arith.constant 0 : i32
    %c0_i32_0 = arith.constant 0 : i32
    %c0_i32_1 = arith.constant 0 : i32
    %c0_i32_2 = arith.constant 0 : i32
    return %c0_i32, %c0_i32_0, %c0_i32_1 : i32, i32, i32
  }
  func.func @transform_2(%arg0: i32, %arg1: i32, %arg2: i32) -> (i32, i32, i32) {
    %c0_i32 = arith.constant 0 : i32
    %c0_i32_0 = arith.constant 0 : i32
    %c0_i32_1 = arith.constant 0 : i32
    %c0_i32_2 = arith.constant 0 : i32
    return %c0_i32, %c0_i32_0, %c0_i32_1 : i32, i32, i32
  }
  func.func @transform_3(%arg0: i32, %arg1: i32, %arg2: i32) -> (i32, i32, i32, i32) {
    %c0_i32 = arith.constant 0 : i32
    %c0_i32_0 = arith.constant 0 : i32
    return %arg0, %arg2, %arg1, %c0_i32 : i32, i32, i32, i32
  }
  func.func @transform_4(%arg0: i32, %arg1: i32, %arg2: i32) -> (i32, i32, i32, i32) {
    %c0_i32 = arith.constant 0 : i32
    %c0_i32_0 = arith.constant 0 : i32
    return %arg0, %arg2, %arg1, %c0_i32 : i32, i32, i32, i32
  }
  func.func @transform_5(%arg0: i32, %arg1: i32, %arg2: i32) -> (i32, i32, i32, i32) {
    %c0_i32 = arith.constant 0 : i32
    %c0_i32_0 = arith.constant 0 : i32
    return %arg0, %arg2, %arg1, %c0_i32 : i32, i32, i32, i32
  }
}

module attributes {stable_mosaic.version = 11 : i64} {
  func.func @_proj_kernel(%arg0: i32, %arg1: i32, %arg2: i32, %arg3: memref<1x1x8x8xbf16, #tpu.memory_space<vmem>>, %arg4: memref<4x8x32xbf16, #tpu.memory_space<vmem>>, %arg5: memref<1x32xf32, #tpu.memory_space<vmem>>, %arg6: memref<1x8x32xf32, #tpu.memory_space<vmem>>, %arg7: memref<8x32xf32, #tpu.memory_space<vmem>>) attributes {dimension_semantics = [#tpu.dimension_semantics<parallel>, #tpu.dimension_semantics<parallel>, #tpu.dimension_semantics<arbitrary>], iteration_bounds = array<i64: 2, 1, 4>, scalar_prefetch = 0 : i64, scratch_operands = 1 : i64, tpu.core_type = #tpu.core_type<tc>, window_params = [{transform_indices = @transform_0, window_bounds = array<i64: 1, 1, 8, 8>}, {pipeline_mode = #tpu.pipeline_mode<synchronous>, transform_indices = @transform_1, window_bounds = array<i64: 4, 8, 32>}, {pipeline_mode = #tpu.pipeline_mode<synchronous>, transform_indices = @transform_2, window_bounds = array<i64: 1, 32>}, {transform_indices = @transform_3, window_bounds = array<i64: 1, 8, 32>}]} {
    %c0_i32 = arith.constant 0 : i32
    %0 = arith.cmpi eq, %arg2, %c0_i32 : i32
    %1 = arith.extui %0 : i1 to i32
    %c0_i32_0 = arith.constant 0 : i32
    %2 = arith.cmpi ne, %1, %c0_i32_0 : i32
    scf.if %2 {
      %c0_11 = arith.constant 0 : index
      %c0_12 = arith.constant 0 : index
      %15 = vector.load %arg5[%c0_11, %c0_12] : memref<1x32xf32, #tpu.memory_space<vmem>>, vector<1x32xf32>
      %16 = vector.shape_cast %15 : vector<1x32xf32> to vector<1x32xf32>
      %17 = vector.broadcast %16 : vector<1x32xf32> to vector<8x32xf32>
      %c0_13 = arith.constant 0 : index
      %c0_14 = arith.constant 0 : index
      %18 = vector.load %arg7[%c0_13, %c0_14] : memref<8x32xf32, #tpu.memory_space<vmem>>, vector<8x32xf32>
      tpu.vector_store %arg7[%c0_13, %c0_14], %17 {strides = array<i32>} : memref<8x32xf32, #tpu.memory_space<vmem>>, vector<8x32xf32>,
    } else {
    }
    %c0 = arith.constant 0 : index
    %c0_1 = arith.constant 0 : index
    %c0_2 = arith.constant 0 : index
    %c0_3 = arith.constant 0 : index
    %3 = vector.load %arg3[%c0, %c0_1, %c0_2, %c0_3] : memref<1x1x8x8xbf16, #tpu.memory_space<vmem>>, vector<1x1x8x8xbf16>
    %4 = vector.shape_cast %3 : vector<1x1x8x8xbf16> to vector<8x8xbf16>
    %5 = arith.index_cast %arg2 : i32 to index
    %c0_4 = arith.constant 0 : index
    %c0_5 = arith.constant 0 : index
    %6 = vector.load %arg4[%5, %c0_4, %c0_5] : memref<4x8x32xbf16, #tpu.memory_space<vmem>>, vector<1x8x32xbf16>
    %7 = vector.shape_cast %6 : vector<1x8x32xbf16> to vector<8x32xbf16>
    %c0_6 = arith.constant 0 : index
    %c0_7 = arith.constant 0 : index
    %8 = vector.load %arg7[%c0_6, %c0_7] : memref<8x32xf32, #tpu.memory_space<vmem>>, vector<8x32xf32>
    %cst = arith.constant dense<0.000000e+00> : vector<8x32xf32>
    %9 = tpu.matmul %4, %7, %cst {dimension_numbers = #tpu.dot_dimension_numbers<[1], [0], [0], [1], [0, 0, 1, 1], [], []>} : vector<8x8xbf16>, vector<8x32xbf16>, vector<8x32xf32> -> vector<8x32xf32>
    %10 = arith.addf %8, %9 : vector<8x32xf32>
    %c0_8 = arith.constant 0 : index
    %c0_9 = arith.constant 0 : index
    %11 = vector.load %arg7[%c0_8, %c0_9] : memref<8x32xf32, #tpu.memory_space<vmem>>, vector<8x32xf32>
    tpu.vector_store %arg7[%c0_8, %c0_9], %10 {strides = array<i32>} : memref<8x32xf32, #tpu.memory_space<vmem>>, vector<8x32xf32>,
    %c3_i32 = arith.constant 3 : i32
    %12 = arith.cmpi eq, %arg2, %c3_i32 : i32
    %13 = arith.extui %12 : i1 to i32
    %c0_i32_10 = arith.constant 0 : i32
    %14 = arith.cmpi ne, %13, %c0_i32_10 : i32
    scf.if %14 {
      %c0_11 = arith.constant 0 : index
      %c0_12 = arith.constant 0 : index
      %15 = vector.load %arg7[%c0_11, %c0_12] : memref<8x32xf32, #tpu.memory_space<vmem>>, vector<8x32xf32>
      %c0_13 = arith.constant 0 : index
      %c0_14 = arith.constant 0 : index
      %c0_15 = arith.constant 0 : index
      %16 = vector.load %arg6[%c0_13, %c0_14, %c0_15] : memref<1x8x32xf32, #tpu.memory_space<vmem>>, vector<1x8x32xf32>
      %17 = vector.shape_cast %16 : vector<1x8x32xf32> to vector<8x32xf32>
      %18 = vector.shape_cast %15 : vector<8x32xf32> to vector<1x8x32xf32>
      tpu.vector_store %arg6[%c0_13, %c0_14, %c0_15], %18 {strides = array<i32>} : memref<1x8x32xf32, #tpu.memory_space<vmem>>, vector<1x8x32xf32>,
    } else {
    }
    return
  }
  func.func @transform_0(%arg0: i32, %arg1: i32, %arg2: i32) -> (i32, i32, i32, i32) {
    %c0_i32 = arith.constant 0 : i32
    %c0_i32_0 = arith.constant 0 : i32
    return %arg0, %arg2, %arg1, %c0_i32 : i32, i32, i32, i32
  }
  func.func @transform_1(%arg0: i32, %arg1: i32, %arg2: i32) -> (i32, i32, i32) {
    %c0_i32 = arith.constant 0 : i32
    %c0_i32_0 = arith.constant 0 : i32
    %c0_i32_1 = arith.constant 0 : i32
    %c0_i32_2 = arith.constant 0 : i32
    return %c0_i32, %c0_i32_0, %c0_i32_1 : i32, i32, i32
  }
  func.func @transform_2(%arg0: i32, %arg1: i32, %arg2: i32) -> (i32, i32) {
    %c0_i32 = arith.constant 0 : i32
    %c0_i32_0 = arith.constant 0 : i32
    %c0_i32_1 = arith.constant 0 : i32
    return %c0_i32, %c0_i32_0 : i32, i32
  }
  func.func @transform_3(%arg0: i32, %arg1: i32, %arg2: i32) -> (i32, i32, i32) {
    %c0_i32 = arith.constant 0 : i32
    %c0_i32_0 = arith.constant 0 : i32
    return %arg0, %arg1, %c0_i32 : i32, i32, i32
  }
}

module attributes {stable_mosaic.version = 11 : i64} {
  func.func @_flash_kernel(%arg0: i32, %arg1: i32, %arg2: i32, %arg3: i32, %arg4: memref<1x1x8x8xbf16, #tpu.memory_space<vmem>>, %arg5: memref<1x1x8x8xbf16, #tpu.memory_space<vmem>>, %arg6: memref<1x1x8x8xbf16, #tpu.memory_space<vmem>>, %arg7: memref<1x1x8x8xbf16, #tpu.memory_space<vmem>>, %arg8: memref<8x1xf32, #tpu.memory_space<vmem>>, %arg9: memref<8x1xf32, #tpu.memory_space<vmem>>, %arg10: memref<8x8xf32, #tpu.memory_space<vmem>>) attributes {dimension_semantics = [#tpu.dimension_semantics<parallel>, #tpu.dimension_semantics<parallel>, #tpu.dimension_semantics<parallel>, #tpu.dimension_semantics<arbitrary>], iteration_bounds = array<i64: 2, 4, 1, 1>, scalar_prefetch = 0 : i64, scratch_operands = 3 : i64, tpu.core_type = #tpu.core_type<tc>, window_params = [{transform_indices = @transform_0, window_bounds = array<i64: 1, 1, 8, 8>}, {transform_indices = @transform_1, window_bounds = array<i64: 1, 1, 8, 8>}, {transform_indices = @transform_2, window_bounds = array<i64: 1, 1, 8, 8>}, {transform_indices = @transform_3, window_bounds = array<i64: 1, 1, 8, 8>}]} {
    %c0_i32 = arith.constant 0 : i32
    %0 = arith.cmpi eq, %arg3, %c0_i32 : i32
    %1 = arith.extui %0 : i1 to i32
    %c0_i32_0 = arith.constant 0 : i32
    %2 = arith.cmpi ne, %1, %c0_i32_0 : i32
    scf.if %2 {
      %cst_29 = arith.constant 0xFF800000 : f32
      %36 = vector.broadcast %cst_29 : f32 to vector<8x1xf32>
      %c0_30 = arith.constant 0 : index
      %c0_31 = arith.constant 0 : index
      %37 = vector.load %arg8[%c0_30, %c0_31] : memref<8x1xf32, #tpu.memory_space<vmem>>, vector<8x1xf32>
      tpu.vector_store %arg8[%c0_30, %c0_31], %36 {strides = array<i32>} : memref<8x1xf32, #tpu.memory_space<vmem>>, vector<8x1xf32>,
      %cst_32 = arith.constant 0.000000e+00 : f32
      %38 = vector.broadcast %cst_32 : f32 to vector<8x1xf32>
      %c0_33 = arith.constant 0 : index
      %c0_34 = arith.constant 0 : index
      %39 = vector.load %arg9[%c0_33, %c0_34] : memref<8x1xf32, #tpu.memory_space<vmem>>, vector<8x1xf32>
      tpu.vector_store %arg9[%c0_33, %c0_34], %38 {strides = array<i32>} : memref<8x1xf32, #tpu.memory_space<vmem>>, vector<8x1xf32>,
      %cst_35 = arith.constant 0.000000e+00 : f32
      %40 = vector.broadcast %cst_35 : f32 to vector<8x8xf32>
      %c0_36 = arith.constant 0 : index
      %c0_37 = arith.constant 0 : index
      %41 = vector.load %arg10[%c0_36, %c0_37] : memref<8x8xf32, #tpu.memory_space<vmem>>, vector<8x8xf32>
      tpu.vector_store %arg10[%c0_36, %c0_37], %40 {strides = array<i32>} : memref<8x8xf32, #tpu.memory_space<vmem>>, vector<8x8xf32>,
    } else {
    }
    %c0 = arith.constant 0 : index
    %c0_1 = arith.constant 0 : index
    %c0_2 = arith.constant 0 : index
    %c0_3 = arith.constant 0 : index
    %3 = vector.load %arg4[%c0, %c0_1, %c0_2, %c0_3] : memref<1x1x8x8xbf16, #tpu.memory_space<vmem>>, vector<1x1x8x8xbf16>
    %4 = vector.shape_cast %3 : vector<1x1x8x8xbf16> to vector<8x8xbf16>
    %c0_4 = arith.constant 0 : index
    %c0_5 = arith.constant 0 : index
    %c0_6 = arith.constant 0 : index
    %c0_7 = arith.constant 0 : index
    %5 = vector.load %arg5[%c0_4, %c0_5, %c0_6, %c0_7] : memref<1x1x8x8xbf16, #tpu.memory_space<vmem>>, vector<1x1x8x8xbf16>
    %6 = vector.shape_cast %5 : vector<1x1x8x8xbf16> to vector<8x8xbf16>
    %cst = arith.constant dense<0.000000e+00> : vector<8x8xf32>
    %7 = tpu.matmul %4, %6, %cst {dimension_numbers = #tpu.dot_dimension_numbers<[1], [1], [0], [0], [0, 0, 1, 0], [], []>} : vector<8x8xbf16>, vector<8x8xbf16>, vector<8x8xf32> -> vector<8x8xf32>
    %c0_8 = arith.constant 0 : index
    %c0_9 = arith.constant 0 : index
    %8 = vector.load %arg8[%c0_8, %c0_9] : memref<8x1xf32, #tpu.memory_space<vmem>>, vector<8x1xf32>
    %cst_10 = arith.constant dense<0xFF800000> : vector<8xf32>
    %9 = vector.multi_reduction <maximumf>, %7, %cst_10 [1] : vector<8x8xf32> to vector<8xf32>
    %10 = vector.shape_cast %9 : vector<8xf32> to vector<8x1xf32>
    %11 = arith.maximumf %8, %10 : vector<8x1xf32>
    %12 = arith.subf %8, %11 : vector<8x1xf32>
    %13 = math.exp %12 : vector<8x1xf32>
    %14 = vector.broadcast %11 : vector<8x1xf32> to vector<8x8xf32>
    %15 = arith.subf %7, %14 : vector<8x8xf32>
    %16 = math.exp %15 : vector<8x8xf32>
    %c0_11 = arith.constant 0 : index
    %c0_12 = arith.constant 0 : index
    %17 = vector.load %arg9[%c0_11, %c0_12] : memref<8x1xf32, #tpu.memory_space<vmem>>, vector<8x1xf32>
    %18 = arith.mulf %13, %17 : vector<8x1xf32>
    %cst_13 = arith.constant dense<0.000000e+00> : vector<8xf32>
    %19 = vector.multi_reduction <add>, %16, %cst_13 [1] : vector<8x8xf32> to vector<8xf32>
    %20 = vector.shape_cast %19 : vector<8xf32> to vector<8x1xf32>
    %21 = arith.addf %18, %20 : vector<8x1xf32>
    %c0_14 = arith.constant 0 : index
    %c0_15 = arith.constant 0 : index
    %22 = vector.load %arg9[%c0_14, %c0_15] : memref<8x1xf32, #tpu.memory_space<vmem>>, vector<8x1xf32>
    tpu.vector_store %arg9[%c0_14, %c0_15], %21 {strides = array<i32>} : memref<8x1xf32, #tpu.memory_space<vmem>>, vector<8x1xf32>,
    %c0_16 = arith.constant 0 : index
    %c0_17 = arith.constant 0 : index
    %23 = vector.load %arg10[%c0_16, %c0_17] : memref<8x8xf32, #tpu.memory_space<vmem>>, vector<8x8xf32>
    %24 = vector.broadcast %13 : vector<8x1xf32> to vector<8x8xf32>
    %25 = arith.mulf %24, %23 : vector<8x8xf32>
    %26 = arith.truncf %16 : vector<8x8xf32> to vector<8x8xbf16>
    %c0_18 = arith.constant 0 : index
    %c0_19 = arith.constant 0 : index
    %c0_20 = arith.constant 0 : index
    %c0_21 = arith.constant 0 : index
    %27 = vector.load %arg6[%c0_18, %c0_19, %c0_20, %c0_21] : memref<1x1x8x8xbf16, #tpu.memory_space<vmem>>, vector<1x1x8x8xbf16>
    %28 = vector.shape_cast %27 : vector<1x1x8x8xbf16> to vector<8x8xbf16>
    %cst_22 = arith.constant dense<0.000000e+00> : vector<8x8xf32>
    %29 = tpu.matmul %26, %28, %cst_22 {dimension_numbers = #tpu.dot_dimension_numbers<[1], [0], [0], [1], [0, 0, 1, 1], [], []>} : vector<8x8xbf16>, vector<8x8xbf16>, vector<8x8xf32> -> vector<8x8xf32>
    %30 = arith.addf %25, %29 : vector<8x8xf32>
    %c0_23 = arith.constant 0 : index
    %c0_24 = arith.constant 0 : index
    %31 = vector.load %arg10[%c0_23, %c0_24] : memref<8x8xf32, #tpu.memory_space<vmem>>, vector<8x8xf32>
    tpu.vector_store %arg10[%c0_23, %c0_24], %30 {strides = array<i32>} : memref<8x8xf32, #tpu.memory_space<vmem>>, vector<8x8xf32>,
    %c0_25 = arith.constant 0 : index
    %c0_26 = arith.constant 0 : index
    %32 = vector.load %arg8[%c0_25, %c0_26] : memref<8x1xf32, #tpu.memory_space<vmem>>, vector<8x1xf32>
    tpu.vector_store %arg8[%c0_25, %c0_26], %11 {strides = array<i32>} : memref<8x1xf32, #tpu.memory_space<vmem>>, vector<8x1xf32>,
    %c0_i32_27 = arith.constant 0 : i32
    %33 = arith.cmpi eq, %arg3, %c0_i32_27 : i32
    %34 = arith.extui %33 : i1 to i32
    %c0_i32_28 = arith.constant 0 : i32
    %35 = arith.cmpi ne, %34, %c0_i32_28 : i32
    scf.if %35 {
      %c0_29 = arith.constant 0 : index
      %c0_30 = arith.constant 0 : index
      %36 = vector.load %arg9[%c0_29, %c0_30] : memref<8x1xf32, #tpu.memory_space<vmem>>, vector<8x1xf32>
      %37 = tpu.reciprocal %36 {approx = true} : vector<8x1xf32> -> vector<8x1xf32>
      %c0_31 = arith.constant 0 : index
      %c0_32 = arith.constant 0 : index
      %38 = vector.load %arg10[%c0_31, %c0_32] : memref<8x8xf32, #tpu.memory_space<vmem>>, vector<8x8xf32>
      %39 = vector.broadcast %37 : vector<8x1xf32> to vector<8x8xf32>
      %40 = arith.mulf %38, %39 : vector<8x8xf32>
      %41 = arith.truncf %40 : vector<8x8xf32> to vector<8x8xbf16>
      %c0_33 = arith.constant 0 : index
      %c0_34 = arith.constant 0 : index
      %c0_35 = arith.constant 0 : index
      %c0_36 = arith.constant 0 : index
      %42 = vector.load %arg7[%c0_33, %c0_34, %c0_35, %c0_36] : memref<1x1x8x8xbf16, #tpu.memory_space<vmem>>, vector<1x1x8x8xbf16>
      %43 = vector.shape_cast %42 : vector<1x1x8x8xbf16> to vector<8x8xbf16>
      %44 = vector.shape_cast %41 : vector<8x8xbf16> to vector<1x1x8x8xbf16>
      tpu.vector_store %arg7[%c0_33, %c0_34, %c0_35, %c0_36], %44 {strides = array<i32>} : memref<1x1x8x8xbf16, #tpu.memory_space<vmem>>, vector<1x1x8x8xbf16>,
    } else {
    }
    return
  }
  func.func @transform_0(%arg0: i32, %arg1: i32, %arg2: i32, %arg3: i32) -> (i32, i32, i32, i32) {
    %c0_i32 = arith.constant 0 : i32
    %c0_i32_0 = arith.constant 0 : i32
    return %arg0, %arg1, %arg2, %c0_i32 : i32, i32, i32, i32
  }
  func.func @transform_1(%arg0: i32, %arg1: i32, %arg2: i32, %arg3: i32) -> (i32, i32, i32, i32) {
    %c0_i32 = arith.constant 0 : i32
    %c0_i32_0 = arith.constant 0 : i32
    return %arg0, %arg1, %arg3, %c0_i32 : i32, i32, i32, i32
  }
  func.func @transform_2(%arg0: i32, %arg1: i32, %arg2: i32, %arg3: i32) -> (i32, i32, i32, i32) {
    %c0_i32 = arith.constant 0 : i32
    %c0_i32_0 = arith.constant 0 : i32
    return %arg0, %arg1, %arg3, %c0_i32 : i32, i32, i32, i32
  }
  func.func @transform_3(%arg0: i32, %arg1: i32, %arg2: i32, %arg3: i32) -> (i32, i32, i32, i32) {
    %c0_i32 = arith.constant 0 : i32
    %c0_i32_0 = arith.constant 0 : i32
    return %arg0, %arg1, %arg2, %c0_i32 : i32, i32, i32, i32
  }
}

</mosaic_0001>

<llo_original>
// kernel: multihead_attention.3
$region0: #{multihead_attention.3}
  #allocation0 [shape = 'u32[]', space=smem, size = 0x4, offset = 0x4, fixed_abs, tag = 'smem constant byte address 0x4 - core index']
  #allocation1 [shape = 'u32[144,128]{1,0:T(1,128)}', space=vmem, size = 0x12000, scoped, tag = 'internal scratch']
  %s0 = inlined_call_operand.vmem [shape: f32[2,8,32], index: 0, kind: input, shape index: {}]
  %s1 = inlined_call_operand.vmem [shape: bf16[4,32,24], index: 1, kind: input, shape index: {}]
  %s2 = inlined_call_operand.vmem [shape: f32[4,1,24], index: 2, kind: input, shape index: {}]
  %s3 = inlined_call_operand.vmem [shape: bf16[2,4,8,8], index: 3, kind: output, shape index: {0}]
  %s4 = inlined_call_operand.vmem [shape: bf16[2,4,8,8], index: 4, kind: output, shape index: {1}]
  %s5 = inlined_call_operand.vmem [shape: bf16[2,4,8,8], index: 5, kind: output, shape index: {2}]
  %6 = xla_tuple %s3, %s4, %s5
  %s7 = sld [smem:[#allocation0]]
  $region61: #{multihead_attention.3} parent=0
    _
  %s9 = ssub.s32 1, %s7
  %s10 = scalar_select 0, %s9, %s7
  loop: start=0, step=1, limit=10
  $region2: #{multihead_attention.3} parent=0 // loop_pre_header
    _
  $region3: #{multihead_attention.3} parent=0 // loop_header
    %s12 = sphi 0, %s16
    %p13 = scmp.ge.s32.totalorder %s12, 10
    %s19 = sphi 0, %s38
    %s20 = sphi 0, %s34
    %s21 = sphi 0, %s30
    %s22 = sphi 0, %s19
    %s23 = sphi 0, %s20
    %s24 = sphi 0, %s21
    %s25 = sphi 0, %s22
    %s26 = sphi 0, %s23
    %s27 = sphi 0, %s24
    %s43 = sphi 0, %s45
    %s46 = sphi 0, %s43
    %s47 = sphi 0, %s46
    %s63 = sphi 0, %s47
    %s67 = sphi 0, %s67
    %s69 = sphi 0, %s67
    %s70 = sphi 0, %s69
    %s84 = sphi 0, %s70
    %s88 = sphi 0, %s88
    %s90 = sphi 0, %s88
    %s91 = sphi 0, %s90
    %s105 = sphi 0, %s91
    %s115 = sphi 0, %s117
    %s118 = sphi 0, %s115
    %s119 = sphi 0, %s118
    %s135 = sphi 0, %s119
    %s145 = sphi 0, %s147
    %s148 = sphi 0, %s145
    %s149 = sphi 0, %s148
    %s165 = sphi 0, %s149
    %s175 = sphi 0, %s177
    %s178 = sphi 0, %s175
    %s179 = sphi 0, %s178
    %s195 = sphi 0, %s179
  $region4: #{multihead_attention.3} parent=0 // loop_header_branch
    %15 = sbr.rel (%p13) target = $region8
  $region5: #{multihead_attention.3} parent=0 // loop_body
    %s17 = ssub.s32 %s12, 1
    %s18 = ssub.s32 %s12, 2
    %s28 = sadd.s32 1, %s21
    %p29 = scmp.ge.s32.totalorder %s28, 4
    %s30 = scalar_select %p29, 0, %s28
    %s31 = sadd.s32 1, %s20
    %s32 = scalar_select %p29, %s31, %s20
    %p33 = scmp.ge.s32.totalorder %s32, 1
    %s34 = scalar_select %p33, 0, %s32
    %s35 = sadd.s32 1, %s19
    %s36 = scalar_select %p33, %s35, %s19
    %p37 = scmp.ge.s32.totalorder %s36, 2
    %s38 = scalar_select %p37, 0, %s36
    %s39 = ssub.s32 %s19, %s38
    %s40 = ssub.s32 %s20, %s34
    %s41 = sor.u32 %s39, %s40
    %p42 = scmp.eq.s32.totalorder %s41, 0
    %s44 = sadd.s32 %s43, 1
    %s45 = scalar_select %p42, %s43, %s44
    %p48 = pneg %p42
    %p49 = scmp.eq.s32.totalorder %s12, 7
    %p50 = por %p48, %p49
    %p51 = scmp.ne.s32.totalorder %s43, %s46
    %p52 = scmp.eq.s32.totalorder %s12, 0
    %p53 = por %p51, %p52
    %p54 = scmp.ne.s32.totalorder %s43, %s46
    %p55 = scmp.eq.s32.totalorder %s17, 7
    %p56 = por %p54, %p55
    %p57 = scmp.ne.s32.totalorder %s46, %s47
    %p58 = scmp.eq.s32.totalorder %s17, 0
    %p59 = por %p57, %p58
    %p60 = scmp.ne.s32.totalorder %s46, %s47
    %p61 = scmp.eq.s32.totalorder %s18, 7
    %p62 = por %p60, %p61
    %p64 = scmp.ne.s32.totalorder %s47, %s63
    %p65 = scmp.eq.s32.totalorder %s18, 0
    %p66 = por %p64, %p65
    %s68 = sadd.s32 %s67, 1
    %p71 = scmp.eq.s32.totalorder %s12, 7
    %p72 = scmp.ne.s32.totalorder %s67, %s69
    %p73 = scmp.eq.s32.totalorder %s12, 0
    %p74 = por %p72, %p73
    %p75 = scmp.ne.s32.totalorder %s67, %s69
    %p76 = scmp.eq.s32.totalorder %s17, 7
    %p77 = por %p75, %p76
    %p78 = scmp.ne.s32.totalorder %s69, %s70
    %p79 = scmp.eq.s32.totalorder %s17, 0
    %p80 = por %p78, %p79
    %p81 = scmp.ne.s32.totalorder %s69, %s70
    %p82 = scmp.eq.s32.totalorder %s18, 7
    %p83 = por %p81, %p82
    %p85 = scmp.ne.s32.totalorder %s70, %s84
    %p86 = scmp.eq.s32.totalorder %s18, 0
    %p87 = por %p85, %p86
    %s89 = sadd.s32 %s88, 1
    %p92 = scmp.eq.s32.totalorder %s12, 7
    %p93 = scmp.ne.s32.totalorder %s88, %s90
    %p94 = scmp.eq.s32.totalorder %s12, 0
    %p95 = por %p93, %p94
    %p96 = scmp.ne.s32.totalorder %s88, %s90
    %p97 = scmp.eq.s32.totalorder %s17, 7
    %p98 = por %p96, %p97
    %p99 = scmp.ne.s32.totalorder %s90, %s91
    %p100 = scmp.eq.s32.totalorder %s17, 0
    %p101 = por %p99, %p100
    %p102 = scmp.ne.s32.totalorder %s90, %s91
    %p103 = scmp.eq.s32.totalorder %s18, 7
    %p104 = por %p102, %p103
    %p106 = scmp.ne.s32.totalorder %s91, %s105
    %p107 = scmp.eq.s32.totalorder %s18, 0
    %p108 = por %p106, %p107
    %s109 = ssub.s32 %s19, %s38
    %s110 = ssub.s32 %s21, %s30
    %s111 = sor.u32 %s109, %s110
    %s112 = ssub.s32 %s20, %s34
    %s113 = sor.u32 %s111, %s112
    %p114 = scmp.eq.s32.totalorder %s113, 0
    %s116 = sadd.s32 %s115, 1
    %s117 = scalar_select %p114, %s115, %s116
    %p120 = pneg %p114
    %p121 = scmp.eq.s32.totalorder %s12, 7
    %p122 = por %p120, %p121
    %p123 = scmp.ne.s32.totalorder %s115, %s118
    %p124 = scmp.eq.s32.totalorder %s12, 0
    %p125 = por %p123, %p124
    %p126 = scmp.ne.s32.totalorder %s115, %s118
    %p127 = scmp.eq.s32.totalorder %s17, 7
    %p128 = por %p126, %p127
    %p129 = scmp.ne.s32.totalorder %s118, %s119
    %p130 = scmp.eq.s32.totalorder %s17, 0
    %p131 = por %p129, %p130
    %p132 = scmp.ne.s32.totalorder %s118, %s119
    %p133 = scmp.eq.s32.totalorder %s18, 7
    %p134 = por %p132, %p133
    %p136 = scmp.ne.s32.totalorder %s119, %s135
    %p137 = scmp.eq.s32.totalorder %s18, 0
    %p138 = por %p136, %p137
    %s139 = ssub.s32 %s19, %s38
    %s140 = ssub.s32 %s21, %s30
    %s141 = sor.u32 %s139, %s140
    %s142 = ssub.s32 %s20, %s34
    %s143 = sor.u32 %s141, %s142
    %p144 = scmp.eq.s32.totalorder %s143, 0
    %s146 = sadd.s32 %s145, 1
    %s147 = scalar_select %p144, %s145, %s146
    %p150 = pneg %p144
    %p151 = scmp.eq.s32.totalorder %s12, 7
    %p152 = por %p150, %p151
    %p153 = scmp.ne.s32.totalorder %s145, %s148
    %p154 = scmp.eq.s32.totalorder %s12, 0
    %p155 = por %p153, %p154
    %p156 = scmp.ne.s32.totalorder %s145, %s148
    %p157 = scmp.eq.s32.totalorder %s17, 7
    %p158 = por %p156, %p157
    %p159 = scmp.ne.s32.totalorder %s148, %s149
    %p160 = scmp.eq.s32.totalorder %s17, 0
    %p161 = por %p159, %p160
    %p162 = scmp.ne.s32.totalorder %s148, %s149
    %p163 = scmp.eq.s32.totalorder %s18, 7
    %p164 = por %p162, %p163
    %p166 = scmp.ne.s32.totalorder %s149, %s165
    %p167 = scmp.eq.s32.totalorder %s18, 0
    %p168 = por %p166, %p167
    %s169 = ssub.s32 %s19, %s38
    %s170 = ssub.s32 %s21, %s30
    %s171 = sor.u32 %s169, %s170
    %s172 = ssub.s32 %s20, %s34
    %s173 = sor.u32 %s171, %s172
    %p174 = scmp.eq.s32.totalorder %s173, 0
    %s176 = sadd.s32 %s175, 1
    %s177 = scalar_select %p174, %s175, %s176
    %p180 = pneg %p174
    %p181 = scmp.eq.s32.totalorder %s12, 7
    %p182 = por %p180, %p181
    %p183 = scmp.ne.s32.totalorder %s175, %s178
    %p184 = scmp.eq.s32.totalorder %s12, 0
    %p185 = por %p183, %p184
    %p186 = scmp.ne.s32.totalorder %s175, %s178
    %p187 = scmp.eq.s32.totalorder %s17, 7
    %p188 = por %p186, %p187
    %p189 = scmp.ne.s32.totalorder %s178, %s179
    %p190 = scmp.eq.s32.totalorder %s17, 0
    %p191 = por %p189, %p190
    %p192 = scmp.ne.s32.totalorder %s178, %s179
    %p193 = scmp.eq.s32.totalorder %s18, 7
    %p194 = por %p192, %p193
    %p196 = scmp.ne.s32.totalorder %s179, %s195
    %p197 = scmp.eq.s32.totalorder %s18, 0
    %p198 = por %p196, %p197
    %p199 = scmp.le.s32.totalorder 1, %s12
    %p200 = scmp.lt.s32.totalorder %s12, 9
    %p201 = pnand %p199, %p200
    %p202 = pneg %p201
    // Predicated region
    $region9: #{multihead_attention.3} parent=5 // pred_check
      _
    $region10: #{multihead_attention.3} parent=5 // pred_check_branch
      %204 = sbr.rel (%p201) target = $region12
    $region11: #{multihead_attention.3} parent=5 // pred_region
      %s205 = ssub.s32 %s12, 1
      // Predicated region
      $region13: #{multihead_attention.3} parent=11 // pred_check
        %p206 = pneg %p80
      $region14: #{multihead_attention.3} parent=11 // pred_check_branch
        %208 = sbr.rel (%p206) target = $region16
      $region15: #{multihead_attention.3} parent=11 // pred_region
        _
      $region16: #{multihead_attention.3} parent=11 // pred_fallthru
        _
      // Predicated region
      $region17: #{multihead_attention.3} parent=11 // pred_check
        %p209 = pneg %p101
      $region18: #{multihead_attention.3} parent=11 // pred_check_branch
        %211 = sbr.rel (%p209) target = $region20
      $region19: #{multihead_attention.3} parent=11 // pred_region
        _
      $region20: #{multihead_attention.3} parent=11 // pred_fallthru
        _
    $region12: #{multihead_attention.3} parent=5 // pred_fallthru
      _
    %p212 = scmp.lt.s32.totalorder %s12, 8
    // Predicated region
    $region21: #{multihead_attention.3} parent=5 // pred_check
      %p213 = pneg %p212
    $region22: #{multihead_attention.3} parent=5 // pred_check_branch
      %215 = sbr.rel (%p213) target = $region24
    $region23: #{multihead_attention.3} parent=5 // pred_region
      // Predicated region
      $region25: #{multihead_attention.3} parent=23 // pred_check
        %p216 = pneg %p53
      $region26: #{multihead_attention.3} parent=23 // pred_check_branch
        %218 = sbr.rel (%p216) target = $region28
      $region27: #{multihead_attention.3} parent=23 // pred_region
        %p219 = scmp.lt.s32.totalorder %s19, 1
        %s220 = scalar_select %p219, %s19, 1
        %p221 = scmp.lt.s32.totalorder %s20, 0
        %s222 = scalar_select %p221, %s20, 0
        %s223 = sadd.s32 %s222, %s220
        %s224 = smul.addr %s223, 8
        %s225 = scalar_lea.vmem %s0, %s224
      $region28: #{multihead_attention.3} parent=23 // pred_fallthru
        _
    $region24: #{multihead_attention.3} parent=5 // pred_fallthru
      _
    %p226 = scmp.le.s32.totalorder 1, %s12
    %p227 = scmp.lt.s32.totalorder %s12, 9
    %p228 = pnand %p226, %p227
    %p229 = pneg %p228
    // Predicated region
    $region29: #{multihead_attention.3} parent=5 // pred_check
      _
    $region30: #{multihead_attention.3} parent=5 // pred_check_branch
      %231 = sbr.rel (%p228) target = $region32
    $region31: #{multihead_attention.3} parent=5 // pred_region
      %s232 = ssub.s32 %s12, 1
      %p233 = scmp.lt.s32.totalorder %s22, 1
      %s234 = scalar_select %p233, %s22, 1
      %p235 = scmp.lt.s32.totalorder %s23, 0
      %s236 = scalar_select %p235, %s23, 0
      %s237 = sadd.s32 %s236, %s234
      %s238 = smul.addr %s237, 8
      %s239 = scalar_lea.vmem %s0, %s238
      %p240 = pneg %p59
      %p241 = pneg %p56
      %p242 = pneg %p80
      %p243 = pneg %p77
      %p244 = pneg %p101
      %p245 = pneg %p98
      %p246 = pneg %p131
      %p247 = pneg %p128
      %p248 = scmp.lt.s32.totalorder %s22, 1
      %s249 = scalar_select %p248, %s22, 1
      %p250 = scmp.lt.s32.totalorder %s24, 3
      %s251 = scalar_select %p250, %s24, 3
      %p252 = scmp.lt.s32.totalorder %s23, 0
      %s253 = scalar_select %p252, %s23, 0
      %s254 = sadd.s32 %s253, %s251
      %s255 = smul.addr %s249, 4
      %s256 = sadd.s32 %s254, %s255
      %s257 = smul.addr %s256, 4
      %s258 = scalar_lea.vmem %s3, %s257
      %p259 = pneg %p161
      %p260 = pneg %p158
      %p261 = scmp.lt.s32.totalorder %s22, 1
      %s262 = scalar_select %p261, %s22, 1
      %p263 = scmp.lt.s32.totalorder %s24, 3
      %s264 = scalar_select %p263, %s24, 3
      %p265 = scmp.lt.s32.totalorder %s23, 0
      %s266 = scalar_select %p265, %s23, 0
      %s267 = sadd.s32 %s266, %s264
      %s268 = smul.addr %s262, 4
      %s269 = sadd.s32 %s267, %s268
      %s270 = smul.addr %s269, 4
      %s271 = scalar_lea.vmem %s4, %s270
      %p272 = pneg %p191
      %p273 = pneg %p188
      %p274 = scmp.lt.s32.totalorder %s22, 1
      %s275 = scalar_select %p274, %s22, 1
      %p276 = scmp.lt.s32.totalorder %s24, 3
      %s277 = scalar_select %p276, %s24, 3
      %p278 = scmp.lt.s32.totalorder %s23, 0
      %s279 = scalar_select %p278, %s23, 0
      %s280 = sadd.s32 %s279, %s277
      %s281 = smul.addr %s275, 4
      %s282 = sadd.s32 %s280, %s281
      %s283 = smul.addr %s282, 4
      %s284 = scalar_lea.vmem %s5, %s283
      %p285 = scmp.lt.s32.totalorder %s22, 1
      %s286 = scalar_select %p285, %s22, 1
      %p287 = scmp.lt.s32.totalorder %s23, 0
      %s288 = scalar_select %p287, %s23, 0
      %s289 = sadd.s32 %s288, %s286
      %s290 = smul.addr %s289, 8
      %s291 = scalar_lea.vmem %s0, %s290
      %p292 = scmp.lt.s32.totalorder %s22, 1
      %s293 = scalar_select %p292, %s22, 1
      %p294 = scmp.lt.s32.totalorder %s24, 3
      %s295 = scalar_select %p294, %s24, 3
      %p296 = scmp.lt.s32.totalorder %s23, 0
      %s297 = scalar_select %p296, %s23, 0
      %s298 = sadd.s32 %s297, %s295
      %s299 = smul.addr %s293, 4
      %s300 = sadd.s32 %s298, %s299
      %s301 = smul.addr %s300, 4
      %s302 = scalar_lea.vmem %s3, %s301
      %p303 = scmp.lt.s32.totalorder %s22, 1
      %s304 = scalar_select %p303, %s22, 1
      %p305 = scmp.lt.s32.totalorder %s24, 3
      %s306 = scalar_select %p305, %s24, 3
      %p307 = scmp.lt.s32.totalorder %s23, 0
      %s308 = scalar_select %p307, %s23, 0
      %s309 = sadd.s32 %s308, %s306
      %s310 = smul.addr %s304, 4
      %s311 = sadd.s32 %s309, %s310
      %s312 = smul.addr %s311, 4
      %s313 = scalar_lea.vmem %s4, %s312
      %p314 = scmp.lt.s32.totalorder %s22, 1
      %s315 = scalar_select %p314, %s22, 1
      %p316 = scmp.lt.s32.totalorder %s24, 3
      %s317 = scalar_select %p316, %s24, 3
      %p318 = scmp.lt.s32.totalorder %s23, 0
      %s319 = scalar_select %p318, %s23, 0
      %s320 = sadd.s32 %s319, %s317
      %s321 = smul.addr %s315, 4
      %s322 = sadd.s32 %s320, %s321
      %s323 = smul.addr %s322, 4
      %s324 = scalar_lea.vmem %s5, %s323
      %v326 = vld [vmem:[%s291] sm:$0xff]
      %v327 = vpack.c.bf16 %v326, %v326
      %s328 = smul.u32 %s24, 4
      %s329 = smul.addr %s328, 4
      %s330 = scalar_lea.vmem %s1, %s329
      %v331 = vld [vmem:[%s330] sm:$0xf]
      %v332 = vld [vmem:[%s330 + $0x4] sm:$0xf]
      %v333 = vld [vmem:[%s330 + $0x8] sm:$0xf]
      %v334 = vld [vmem:[%s330 + $0xc] sm:$0xf]
      %s335 = scalar_lea.vmem %s2, %s24
      %v336 = vld [vmem:[%s335] sm:$0x1]
      %v338 = vlaneseq
      %v339 = vshrl.u32 %v338, 7
      %v340 = vsub.s32 0, %v339
      %v341 = vrot.slane %v336, %v340
      %v347 = vunpack.c.l.b16 %v331
      %v348 = vunpack.c.l.b16 %v332
      %v349 = vunpack.c.l.b16 %v333
      %v350 = vunpack.c.l.b16 %v334
      %v351 = vpack.c.b16 %v348, %v347
      %v352 = vpack.c.b16 %v350, %v349
      %vm355 = vcmask 261120
      %v357 = vsel %vm355, %v327, 0
      %359 = vmatprep.subr.bf16.mxu0 0
      %360 = vmatpush1.bf16.msra.mxu0 %v351
      %361 = vmatprep.subr.bf16.mxu0 0
      %362 = vmatpush1.bf16.msra.mxu0 %v352
      %363 = vmatprep.subr.bf16.mxu0 0
      %364 = vmatpush1.bf16.msra.mxu0 0
      %365 = vmatprep.subr.bf16.mxu0 0
      %366 = vmatpush1.bf16.msra.mxu0 0
      %367 = vmatprep.subr.bf16.mxu0 0
      %368 = vmatpush1.bf16.msra.mxu0 0
      %369 = vmatprep.subr.bf16.mxu0 0
      %370 = vmatpush1.bf16.msra.mxu0 0
      %371 = vmatprep.subr.bf16.mxu0 0
      %372 = vmatpush1.bf16.msra.mxu0 0
      %373 = vmatprep.subr.bf16.mxu0 0
      %374 = vmatpush1.bf16.msra.mxu0 0
      %375 = vmatprep.subr.bf16.mxu0 0
      %376 = vmatpush1.bf16.msra.mxu0 0
      %377 = vmatprep.subr.bf16.mxu0 0
      %378 = vmatpush1.bf16.msra.mxu0 0
      %379 = vmatprep.subr.bf16.mxu0 0
      %380 = vmatpush1.bf16.msra.mxu0 0
      %381 = vmatprep.subr.bf16.mxu0 0
      %382 = vmatpush1.bf16.msra.mxu0 0
      %383 = vmatprep.subr.bf16.mxu0 0
      %384 = vmatpush1.bf16.msra.mxu0 0
      %385 = vmatprep.subr.bf16.mxu0 0
      %386 = vmatpush1.bf16.msra.mxu0 0
      %387 = vmatprep.subr.bf16.mxu0 0
      %388 = vmatpush1.bf16.msra.mxu0 0
      %389 = vmatprep.subr.bf16.mxu0 0
      %390 = vmatpush1.bf16.msra.mxu0 0
      %391 = vmatprep.mubr.bf16.mxu0 0
      %392 = vmatmul.mubr.bf16.gmra.mrb[0].mxu0 %v357
      %v393 = vpop.f32.mrb[0].mxu0
      %v394 = vadd.f32 %v341, %v393
      %v395 = vpop.f32.mrb[0].mxu0
      %v396 = vpop.f32.mrb[0].mxu0
      %v397 = vpop.f32.mrb[0].mxu0
      %398 = vdwg.mxu0
      %v399 = vpack.c.bf16 %v394, %v394
      %vm400 = vcmask 60416
      %401 = vst.msk [vmem:[%s302] sm:$0xf] %vm400, %v399
      %v403 = vunpack.c.l.b16 %v399
      %v404 = vpack.c.b16 %v403, %v403
      %405 = vrot.lane.b32.xlu0 %v404, 120
      %v406 = vpop.permute.xlu0 %405
      %408 = vst.msk [vmem:[%s313] sm:$0xf] %vm400, %v406
      %409 = vrot.lane.b32.xlu0 %v404, 112
      %v410 = vpop.permute.xlu0 %409
      %412 = vst.msk [vmem:[%s324] sm:$0xf] %vm400, %v410
      %p413 = scmp.lt.s32.totalorder %s22, 1
      %s414 = scalar_select %p413, %s22, 1
      %p415 = scmp.lt.s32.totalorder %s24, 3
      %s416 = scalar_select %p415, %s24, 3
      %p417 = scmp.lt.s32.totalorder %s23, 0
      %s418 = scalar_select %p417, %s23, 0
      %s419 = sadd.s32 %s418, %s416
      %s420 = smul.addr %s414, 4
      %s421 = sadd.s32 %s419, %s420
      %s422 = smul.addr %s421, 4
      %s423 = scalar_lea.vmem %s3, %s422
      %p424 = scmp.lt.s32.totalorder %s22, 1
      %s425 = scalar_select %p424, %s22, 1
      %p426 = scmp.lt.s32.totalorder %s24, 3
      %s427 = scalar_select %p426, %s24, 3
      %p428 = scmp.lt.s32.totalorder %s23, 0
      %s429 = scalar_select %p428, %s23, 0
      %s430 = sadd.s32 %s429, %s427
      %s431 = smul.addr %s425, 4
      %s432 = sadd.s32 %s430, %s431
      %s433 = smul.addr %s432, 4
      %s434 = scalar_lea.vmem %s4, %s433
      %p435 = scmp.lt.s32.totalorder %s22, 1
      %s436 = scalar_select %p435, %s22, 1
      %p437 = scmp.lt.s32.totalorder %s24, 3
      %s438 = scalar_select %p437, %s24, 3
      %p439 = scmp.lt.s32.totalorder %s23, 0
      %s440 = scalar_select %p439, %s23, 0
      %s441 = sadd.s32 %s440, %s438
      %s442 = smul.addr %s436, 4
      %s443 = sadd.s32 %s441, %s442
      %s444 = smul.addr %s443, 4
      %s445 = scalar_lea.vmem %s5, %s444
      // Predicated region
      $region33: #{multihead_attention.3} parent=31 // pred_check
        %p446 = pneg %p128
      $region34: #{multihead_attention.3} parent=31 // pred_check_branch
        %448 = sbr.rel (%p446) target = $region36
      $region35: #{multihead_attention.3} parent=31 // pred_region
        _
      $region36: #{multihead_attention.3} parent=31 // pred_fallthru
        _
      // Predicated region
      $region37: #{multihead_attention.3} parent=31 // pred_check
        %p449 = pneg %p158
      $region38: #{multihead_attention.3} parent=31 // pred_check_branch
        %451 = sbr.rel (%p449) target = $region40
      $region39: #{multihead_attention.3} parent=31 // pred_region
        _
      $region40: #{multihead_attention.3} parent=31 // pred_fallthru
        _
      // Predicated region
      $region41: #{multihead_attention.3} parent=31 // pred_check
        %p452 = pneg %p188
      $region42: #{multihead_attention.3} parent=31 // pred_check_branch
        %454 = sbr.rel (%p452) target = $region44
      $region43: #{multihead_attention.3} parent=31 // pred_region
        _
      $region44: #{multihead_attention.3} parent=31 // pred_fallthru
        _
    $region32: #{multihead_attention.3} parent=5 // pred_fallthru
      _
    %p455 = scmp.le.s32.totalorder 2, %s12
    // Predicated region
    $region45: #{multihead_attention.3} parent=5 // pred_check
      %p456 = pneg %p455
    $region46: #{multihead_attention.3} parent=5 // pred_check_branch
      %458 = sbr.rel (%p456) target = $region48
    $region47: #{multihead_attention.3} parent=5 // pred_region
      %s459 = ssub.s32 %s12, 2
      // Predicated region
      $region49: #{multihead_attention.3} parent=47 // pred_check
        %p460 = pneg %p134
      $region50: #{multihead_attention.3} parent=47 // pred_check_branch
        %462 = sbr.rel (%p460) target = $region52
      $region51: #{multihead_attention.3} parent=47 // pred_region
        %p463 = scmp.lt.s32.totalorder %s25, 1
        %s464 = scalar_select %p463, %s25, 1
        %p465 = scmp.lt.s32.totalorder %s27, 3
        %s466 = scalar_select %p465, %s27, 3
        %p467 = scmp.lt.s32.totalorder %s26, 0
        %s468 = scalar_select %p467, %s26, 0
        %s469 = sadd.s32 %s468, %s466
        %s470 = smul.addr %s464, 4
        %s471 = sadd.s32 %s469, %s470
        %s472 = smul.addr %s471, 4
        %s473 = scalar_lea.vmem %s3, %s472
      $region52: #{multihead_attention.3} parent=47 // pred_fallthru
        _
      // Predicated region
      $region53: #{multihead_attention.3} parent=47 // pred_check
        %p474 = pneg %p164
      $region54: #{multihead_attention.3} parent=47 // pred_check_branch
        %476 = sbr.rel (%p474) target = $region56
      $region55: #{multihead_attention.3} parent=47 // pred_region
        %p477 = scmp.lt.s32.totalorder %s25, 1
        %s478 = scalar_select %p477, %s25, 1
        %p479 = scmp.lt.s32.totalorder %s27, 3
        %s480 = scalar_select %p479, %s27, 3
        %p481 = scmp.lt.s32.totalorder %s26, 0
        %s482 = scalar_select %p481, %s26, 0
        %s483 = sadd.s32 %s482, %s480
        %s484 = smul.addr %s478, 4
        %s485 = sadd.s32 %s483, %s484
        %s486 = smul.addr %s485, 4
        %s487 = scalar_lea.vmem %s4, %s486
      $region56: #{multihead_attention.3} parent=47 // pred_fallthru
        _
      // Predicated region
      $region57: #{multihead_attention.3} parent=47 // pred_check
        %p488 = pneg %p194
      $region58: #{multihead_attention.3} parent=47 // pred_check_branch
        %490 = sbr.rel (%p488) target = $region60
      $region59: #{multihead_attention.3} parent=47 // pred_region
        %p491 = scmp.lt.s32.totalorder %s25, 1
        %s492 = scalar_select %p491, %s25, 1
        %p493 = scmp.lt.s32.totalorder %s27, 3
        %s494 = scalar_select %p493, %s27, 3
        %p495 = scmp.lt.s32.totalorder %s26, 0
        %s496 = scalar_select %p495, %s26, 0
        %s497 = sadd.s32 %s496, %s494
        %s498 = smul.addr %s492, 4
        %s499 = sadd.s32 %s497, %s498
        %s500 = smul.addr %s499, 4
        %s501 = scalar_lea.vmem %s5, %s500
      $region60: #{multihead_attention.3} parent=47 // pred_fallthru
        _
    $region48: #{multihead_attention.3} parent=5 // pred_fallthru
      _
  $region6: #{multihead_attention.3} parent=0 // loop_footer
    %s16 = sadd.s32 1, %s12
  $region7: #{multihead_attention.3} parent=0 // loop_footer_branch
    %11 = sbr.rel target = $region3
  $region8: #{multihead_attention.3} parent=0 // loop_exit
    _

// kernel: multihead_attention.5
$region0: #{multihead_attention.5}
  #allocation0 [shape = 'u32[]', space=smem, size = 0x4, offset = 0x4, fixed_abs, tag = 'smem constant byte address 0x4 - core index']
  #allocation1 [shape = 'u32[144,128]{1,0:T(1,128)}', space=vmem, size = 0x12000, scoped, tag = 'internal scratch']
  #allocation2 [shape = 'f32[8,32]{1,0:T(8,128)}', space=vmem, size = 0x1000, scoped, tag = 'scratch operand']
  %s0 = inlined_call_operand.vmem [shape: bf16[2,4,8,8], index: 0, kind: input, shape index: {}]
  %s1 = inlined_call_operand.vmem [shape: bf16[4,8,32], index: 1, kind: input, shape index: {}]
  %s2 = inlined_call_operand.vmem [shape: f32[1,32], index: 2, kind: input, shape index: {}]
  %s3 = inlined_call_operand.hbm [shape: f32[2,8,32], index: 3, kind: output, shape index: {}]
  %s4 = sld [smem:[#allocation0]]
  $region53: #{multihead_attention.5} parent=0
    _
  %s6 = ssub.s32 1, %s4
  %s7 = scalar_select 0, %s6, %s4
  $region1: #{multihead_attention.5} parent=0
    #allocation3 [shape = 'u8[8192]{0}', space=vmem, size = 0x2000, scoped, tag = 'output window, operand 0']
    #allocation4 [shape = 's32[2]{0}', space=sflag, size = 0x8, scoped, tag = 'scoped memory for multihead_attention.5']
    %8 = vsyncpa [#allocation4], 0
    %s9 = scalar_lea.sflag [#allocation4], 1
    %10 = vsyncpa %s9, 0
    loop: start=0, step=1, limit=10
    $region2: #{multihead_attention.5} parent=1 // loop_pre_header
      _
    $region3: #{multihead_attention.5} parent=1 // loop_header
      %s12 = sphi 0, %s16
      %p13 = scmp.ge.s32.totalorder %s12, 10
      %s19 = sphi 0, %s38
      %s20 = sphi 0, %s34
      %s21 = sphi 0, %s30
      %s22 = sphi 0, %s19
      %s23 = sphi 0, %s20
      %s24 = sphi 0, %s21
      %s25 = sphi 0, %s22
      %s26 = sphi 0, %s23
      %s27 = sphi 0, %s24
      %s45 = sphi 0, %s47
      %s48 = sphi 0, %s45
      %s49 = sphi 0, %s48
      %s65 = sphi 0, %s49
      %s69 = sphi 0, %s69
      %s71 = sphi 0, %s69
      %s72 = sphi 0, %s71
      %s86 = sphi 0, %s72
      %s90 = sphi 0, %s90
      %s92 = sphi 0, %s90
      %s93 = sphi 0, %s92
      %s107 = sphi 0, %s93
      %s115 = sphi 0, %s117
      %s118 = sphi 0, %s115
      %s119 = sphi 0, %s118
      %s135 = sphi 0, %s119
    $region4: #{multihead_attention.5} parent=1 // loop_header_branch
      %15 = sbr.rel (%p13) target = $region8
    $region5: #{multihead_attention.5} parent=1 // loop_body
      %s17 = ssub.s32 %s12, 1
      %s18 = ssub.s32 %s12, 2
      %s28 = sadd.s32 1, %s21
      %p29 = scmp.ge.s32.totalorder %s28, 4
      %s30 = scalar_select %p29, 0, %s28
      %s31 = sadd.s32 1, %s20
      %s32 = scalar_select %p29, %s31, %s20
      %p33 = scmp.ge.s32.totalorder %s32, 1
      %s34 = scalar_select %p33, 0, %s32
      %s35 = sadd.s32 1, %s19
      %s36 = scalar_select %p33, %s35, %s19
      %p37 = scmp.ge.s32.totalorder %s36, 2
      %s38 = scalar_select %p37, 0, %s36
      %s39 = ssub.s32 %s19, %s38
      %s40 = ssub.s32 %s21, %s30
      %s41 = sor.u32 %s39, %s40
      %s42 = ssub.s32 %s20, %s34
      %s43 = sor.u32 %s41, %s42
      %p44 = scmp.eq.s32.totalorder %s43, 0
      %s46 = sadd.s32 %s45, 1
      %s47 = scalar_select %p44, %s45, %s46
      %p50 = pneg %p44
      %p51 = scmp.eq.s32.totalorder %s12, 7
      %p52 = por %p50, %p51
      %p53 = scmp.ne.s32.totalorder %s45, %s48
      %p54 = scmp.eq.s32.totalorder %s12, 0
      %p55 = por %p53, %p54
      %p56 = scmp.ne.s32.totalorder %s45, %s48
      %p57 = scmp.eq.s32.totalorder %s17, 7
      %p58 = por %p56, %p57
      %p59 = scmp.ne.s32.totalorder %s48, %s49
      %p60 = scmp.eq.s32.totalorder %s17, 0
      %p61 = por %p59, %p60
      %p62 = scmp.ne.s32.totalorder %s48, %s49
      %p63 = scmp.eq.s32.totalorder %s18, 7
      %p64 = por %p62, %p63
      %p66 = scmp.ne.s32.totalorder %s49, %s65
      %p67 = scmp.eq.s32.totalorder %s18, 0
      %p68 = por %p66, %p67
      %s70 = sadd.s32 %s69, 1
      %p73 = scmp.eq.s32.totalorder %s12, 7
      %p74 = scmp.ne.s32.totalorder %s69, %s71
      %p75 = scmp.eq.s32.totalorder %s12, 0
      %p76 = por %p74, %p75
      %p77 = scmp.ne.s32.totalorder %s69, %s71
      %p78 = scmp.eq.s32.totalorder %s17, 7
      %p79 = por %p77, %p78
      %p80 = scmp.ne.s32.totalorder %s71, %s72
      %p81 = scmp.eq.s32.totalorder %s17, 0
      %p82 = por %p80, %p81
      %p83 = scmp.ne.s32.totalorder %s71, %s72
      %p84 = scmp.eq.s32.totalorder %s18, 7
      %p85 = por %p83, %p84
      %p87 = scmp.ne.s32.totalorder %s72, %s86
      %p88 = scmp.eq.s32.totalorder %s18, 0
      %p89 = por %p87, %p88
      %s91 = sadd.s32 %s90, 1
      %p94 = scmp.eq.s32.totalorder %s12, 7
      %p95 = scmp.ne.s32.totalorder %s90, %s92
      %p96 = scmp.eq.s32.totalorder %s12, 0
      %p97 = por %p95, %p96
      %p98 = scmp.ne.s32.totalorder %s90, %s92
      %p99 = scmp.eq.s32.totalorder %s17, 7
      %p100 = por %p98, %p99
      %p101 = scmp.ne.s32.totalorder %s92, %s93
      %p102 = scmp.eq.s32.totalorder %s17, 0
      %p103 = por %p101, %p102
      %p104 = scmp.ne.s32.totalorder %s92, %s93
      %p105 = scmp.eq.s32.totalorder %s18, 7
      %p106 = por %p104, %p105
      %p108 = scmp.ne.s32.totalorder %s93, %s107
      %p109 = scmp.eq.s32.totalorder %s18, 0
      %p110 = por %p108, %p109
      %s111 = ssub.s32 %s19, %s38
      %s112 = ssub.s32 %s20, %s34
      %s113 = sor.u32 %s111, %s112
      %p114 = scmp.eq.s32.totalorder %s113, 0
      %s116 = sadd.s32 %s115, 1
      %s117 = scalar_select %p114, %s115, %s116
      %p120 = pneg %p114
      %p121 = scmp.eq.s32.totalorder %s12, 7
      %p122 = por %p120, %p121
      %p123 = scmp.ne.s32.totalorder %s115, %s118
      %p124 = scmp.eq.s32.totalorder %s12, 0
      %p125 = por %p123, %p124
      %p126 = scmp.ne.s32.totalorder %s115, %s118
      %p127 = scmp.eq.s32.totalorder %s17, 7
      %p128 = por %p126, %p127
      %p129 = scmp.ne.s32.totalorder %s118, %s119
      %p130 = scmp.eq.s32.totalorder %s17, 0
      %p131 = por %p129, %p130
      %p132 = scmp.ne.s32.totalorder %s118, %s119
      %p133 = scmp.eq.s32.totalorder %s18, 7
      %p134 = por %p132, %p133
      %p136 = scmp.ne.s32.totalorder %s119, %s135
      %p137 = scmp.eq.s32.totalorder %s18, 0
      %p138 = por %p136, %p137
      %p139 = scmp.le.s32.totalorder 1, %s12
      %p140 = scmp.lt.s32.totalorder %s12, 9
      %p141 = pnand %p139, %p140
      %p142 = pneg %p141
      // Predicated region
      $region9: #{multihead_attention.5} parent=5 // pred_check
        _
      $region10: #{multihead_attention.5} parent=5 // pred_check_branch
        %144 = sbr.rel (%p141) target = $region12
      $region11: #{multihead_attention.5} parent=5 // pred_region
        %s145 = ssub.s32 %s12, 1
        // Predicated region
        $region13: #{multihead_attention.5} parent=11 // pred_check
          %p146 = pneg %p82
        $region14: #{multihead_attention.5} parent=11 // pred_check_branch
          %148 = sbr.rel (%p146) target = $region16
        $region15: #{multihead_attention.5} parent=11 // pred_region
          _
        $region16: #{multihead_attention.5} parent=11 // pred_fallthru
          _
        // Predicated region
        $region17: #{multihead_attention.5} parent=11 // pred_check
          %p149 = pneg %p103
        $region18: #{multihead_attention.5} parent=11 // pred_check_branch
          %151 = sbr.rel (%p149) target = $region20
        $region19: #{multihead_attention.5} parent=11 // pred_region
          _
        $region20: #{multihead_attention.5} parent=11 // pred_fallthru
          _
      $region12: #{multihead_attention.5} parent=5 // pred_fallthru
        _
      %p152 = scmp.lt.s32.totalorder %s12, 8
      // Predicated region
      $region21: #{multihead_attention.5} parent=5 // pred_check
        %p153 = pneg %p152
      $region22: #{multihead_attention.5} parent=5 // pred_check_branch
        %155 = sbr.rel (%p153) target = $region24
      $region23: #{multihead_attention.5} parent=5 // pred_region
        // Predicated region
        $region25: #{multihead_attention.5} parent=23 // pred_check
          %p156 = pneg %p55
        $region26: #{multihead_attention.5} parent=23 // pred_check_branch
          %158 = sbr.rel (%p156) target = $region28
        $region27: #{multihead_attention.5} parent=23 // pred_region
          %p159 = scmp.lt.s32.totalorder %s19, 1
          %s160 = scalar_select %p159, %s19, 1
          %p161 = scmp.lt.s32.totalorder %s21, 3
          %s162 = scalar_select %p161, %s21, 3
          %p163 = scmp.lt.s32.totalorder %s20, 0
          %s164 = scalar_select %p163, %s20, 0
          %s165 = sadd.s32 %s164, %s162
          %s166 = smul.addr %s160, 4
          %s167 = sadd.s32 %s165, %s166
          %s168 = smul.addr %s167, 4
          %s169 = scalar_lea.vmem %s0, %s168
        $region28: #{multihead_attention.5} parent=23 // pred_fallthru
          _
      $region24: #{multihead_attention.5} parent=5 // pred_fallthru
        _
      %p170 = scmp.le.s32.totalorder 1, %s12
      %p171 = scmp.lt.s32.totalorder %s12, 9
      %p172 = pnand %p170, %p171
      %p173 = pneg %p172
      // Predicated region
      $region29: #{multihead_attention.5} parent=5 // pred_check
        _
      $region30: #{multihead_attention.5} parent=5 // pred_check_branch
        %175 = sbr.rel (%p172) target = $region32
      $region31: #{multihead_attention.5} parent=5 // pred_region
        %s176 = ssub.s32 %s12, 1
        %p177 = scmp.lt.s32.totalorder %s22, 1
        %s178 = scalar_select %p177, %s22, 1
        %p179 = scmp.lt.s32.totalorder %s24, 3
        %s180 = scalar_select %p179, %s24, 3
        %p181 = scmp.lt.s32.totalorder %s23, 0
        %s182 = scalar_select %p181, %s23, 0
        %s183 = sadd.s32 %s182, %s180
        %s184 = smul.addr %s178, 4
        %s185 = sadd.s32 %s183, %s184
        %s186 = smul.addr %s185, 4
        %s187 = scalar_lea.vmem %s0, %s186
        %p188 = pneg %p61
        %p189 = pneg %p58
        %p190 = pneg %p82
        %p191 = pneg %p79
        %p192 = pneg %p103
        %p193 = pneg %p100
        %p194 = pneg %p131
        %p195 = pneg %p128
        %s196 = sand.u32 %s118, 1
        %s197 = scalar_lea.sflag [#allocation4], %s196
        %s198 = sand.u32 %s118, 1
        %s199 = smul.addr %s198, 8
        %s200 = scalar_lea.vmem [#allocation3], %s199
        %p201 = scmp.lt.s32.totalorder %s22, 1
        %s202 = scalar_select %p201, %s22, 1
        %p203 = scmp.lt.s32.totalorder %s24, 3
        %s204 = scalar_select %p203, %s24, 3
        %p205 = scmp.lt.s32.totalorder %s23, 0
        %s206 = scalar_select %p205, %s23, 0
        %s207 = sadd.s32 %s206, %s204
        %s208 = smul.addr %s202, 4
        %s209 = sadd.s32 %s207, %s208
        %s210 = smul.addr %s209, 4
        %s211 = scalar_lea.vmem %s0, %s210
        %p213 = scmp.eq.s32.totalorder %s24, 0
        // Predicated region
        $region33: #{multihead_attention.5} parent=31 // pred_check
          %p214 = pneg %p213
        $region34: #{multihead_attention.5} parent=31 // pred_check_branch
          %216 = sbr.rel (%p214) target = $region36
        $region35: #{multihead_attention.5} parent=31 // pred_region
          %v217 = vld [vmem:[%s2] sm:$0x1]
          %v219 = vlaneseq
          %v220 = vshrl.u32 %v219, 7
          %v221 = vsub.s32 0, %v220
          %v222 = vrot.slane %v217, %v221
          %vm224 = vcmask 261120
          %225 = vst.msk [vmem:[#allocation2] sm:$0xff] %vm224, %v222
        $region36: #{multihead_attention.5} parent=31 // pred_fallthru
          _
        %v226 = vld [vmem:[%s211] sm:$0xf]
        %s227 = smul.addr %s24, 4
        %s228 = scalar_lea.vmem %s1, %s227
        %v229 = vld [vmem:[%s228] sm:$0xf]
        %v230 = vld [vmem:[#allocation2] sm:$0xff]
        %vm231 = vcmask 64512
        %v233 = vsel %vm231, %v226, 0
        %vm235 = vcmask 1043456
        %v237 = vsel %vm235, %v229, 0
        %239 = vmatprep.subr.bf16.mxu0 0
        %240 = vmatpush1.bf16.msra.mxu0 %v237
        %241 = vmatprep.subr.bf16.mxu0 0
        %242 = vmatpush1.bf16.msra.mxu0 0
        %243 = vmatprep.subr.bf16.mxu0 0
        %244 = vmatpush1.bf16.msra.mxu0 0
        %245 = vmatprep.subr.bf16.mxu0 0
        %246 = vmatpush1.bf16.msra.mxu0 0
        %247 = vmatprep.subr.bf16.mxu0 0
        %248 = vmatpush1.bf16.msra.mxu0 0
        %249 = vmatprep.subr.bf16.mxu0 0
        %250 = vmatpush1.bf16.msra.mxu0 0
        %251 = vmatprep.subr.bf16.mxu0 0
        %252 = vmatpush1.bf16.msra.mxu0 0
        %253 = vmatprep.subr.bf16.mxu0 0
        %254 = vmatpush1.bf16.msra.mxu0 0
        %255 = vmatprep.subr.bf16.mxu0 0
        %256 = vmatpush1.bf16.msra.mxu0 0
        %257 = vmatprep.subr.bf16.mxu0 0
        %258 = vmatpush1.bf16.msra.mxu0 0
        %259 = vmatprep.subr.bf16.mxu0 0
        %260 = vmatpush1.bf16.msra.mxu0 0
        %261 = vmatprep.subr.bf16.mxu0 0
        %262 = vmatpush1.bf16.msra.mxu0 0
        %263 = vmatprep.subr.bf16.mxu0 0
        %264 = vmatpush1.bf16.msra.mxu0 0
        %265 = vmatprep.subr.bf16.mxu0 0
        %266 = vmatpush1.bf16.msra.mxu0 0
        %267 = vmatprep.subr.bf16.mxu0 0
        %268 = vmatpush1.bf16.msra.mxu0 0
        %269 = vmatprep.subr.bf16.mxu0 0
        %270 = vmatpush1.bf16.msra.mxu0 0
        %271 = vmatprep.mubr.bf16.mxu0 0
        %272 = vmatmul.mubr.bf16.gmra.mrb[0].mxu0 %v233
        %v273 = vpop.f32.mrb[0].mxu0
        %v274 = vadd.f32 0.0, %v273
        %v275 = vpop.f32.mrb[0].mxu0
        %v276 = vpop.f32.mrb[0].mxu0
        %v277 = vpop.f32.mrb[0].mxu0
        %278 = vdwg.mxu0
        %v279 = vadd.f32 %v230, %v274
        %vm280 = vcmask 261120
        %281 = vst.msk [vmem:[#allocation2] sm:$0xff] %vm280, %v279
        %p282 = scmp.eq.s32.totalorder %s24, 3
        // Predicated region
        $region37: #{multihead_attention.5} parent=31 // pred_check
          %p283 = pneg %p282
        $region38: #{multihead_attention.5} parent=31 // pred_check_branch
          %285 = sbr.rel (%p283) target = $region40
        $region39: #{multihead_attention.5} parent=31 // pred_region
          %v286 = vld [vmem:[#allocation2] sm:$0xff]
          %287 = vst.msk [vmem:[%s200] sm:$0xff] %vm280, %v286
        $region40: #{multihead_attention.5} parent=31 // pred_fallthru
          _
        %s288 = sand.u32 %s118, 1
        %s289 = scalar_lea.sflag [#allocation4], %s288
        %s290 = sand.u32 %s118, 1
        %s291 = smul.addr %s290, 8
        %s292 = scalar_lea.vmem [#allocation3], %s291
        // Predicated region
        $region41: #{multihead_attention.5} parent=31 // pred_check
          %p293 = pneg %p128
        $region42: #{multihead_attention.5} parent=31 // pred_check_branch
          %295 = sbr.rel (%p293) target = $region44
        $region43: #{multihead_attention.5} parent=31 // pred_region
          %s297 = ssub.s32 128, 128
          %298 = vsyncadd %s289, %s297
          %s299 = sadd.s32 %s23, %s22
          %s300 = smul.addr %s299, 128
          %s301 = scalar_lea.hbm %s3, %s300
          %s303 = sshll.u32 %s292, 4
          %s304 = int_to_ptr.vmem [resolvable:$true] %s303
          %306 = dma.vmem_to_hbm [thread:$0]  %s304, 128, %s301, %s289
        $region44: #{multihead_attention.5} parent=31 // pred_fallthru
          _
      $region32: #{multihead_attention.5} parent=5 // pred_fallthru
        _
      %p307 = scmp.le.s32.totalorder 2, %s12
      // Predicated region
      $region45: #{multihead_attention.5} parent=5 // pred_check
        %p308 = pneg %p307
      $region46: #{multihead_attention.5} parent=5 // pred_check_branch
        %310 = sbr.rel (%p308) target = $region48
      $region47: #{multihead_attention.5} parent=5 // pred_region
        %s311 = ssub.s32 %s12, 2
        // Predicated region
        $region49: #{multihead_attention.5} parent=47 // pred_check
          %p312 = pneg %p134
        $region50: #{multihead_attention.5} parent=47 // pred_check_branch
          %314 = sbr.rel (%p312) target = $region52
        $region51: #{multihead_attention.5} parent=47 // pred_region
          %s315 = sand.u32 %s119, 1
          %s316 = scalar_lea.sflag [#allocation4], %s315
          %s317 = sand.u32 %s119, 1
          %s318 = smul.addr %s317, 8
          %s319 = scalar_lea.vmem [#allocation3], %s318
          %320 = dma.done %s316, 128
        $region52: #{multihead_attention.5} parent=47 // pred_fallthru
          _
      $region48: #{multihead_attention.5} parent=5 // pred_fallthru
        _
    $region6: #{multihead_attention.5} parent=1 // loop_footer
      %s16 = sadd.s32 1, %s12
    $region7: #{multihead_attention.5} parent=1 // loop_footer_branch
      %11 = sbr.rel target = $region3
    $region8: #{multihead_attention.5} parent=1 // loop_exit
      _
    %321 = vsyncpa [#allocation4], 1
    %s322 = scalar_lea.sflag [#allocation4], 1
    %323 = vsyncpa %s322, 1

// kernel: multihead_attention.4
$region0: #{multihead_attention.4}
  #allocation0 [shape = 'u32[]', space=smem, size = 0x4, offset = 0x4, fixed_abs, tag = 'smem constant byte address 0x4 - core index']
  #allocation1 [shape = 'u32[144,128]{1,0:T(1,128)}', space=vmem, size = 0x12000, scoped, tag = 'internal scratch']
  #allocation2 [shape = 'f32[8,1]{1,0:T(8,128)}', space=vmem, size = 0x1000, scoped, tag = 'scratch operand']
  #allocation3 [shape = 'f32[8,1]{1,0:T(8,128)}', space=vmem, size = 0x1000, scoped, tag = 'scratch operand']
  #allocation4 [shape = 'f32[8,8]{1,0:T(8,128)}', space=vmem, size = 0x1000, scoped, tag = 'scratch operand']
  %s0 = inlined_call_operand.vmem [shape: bf16[2,4,8,8], index: 0, kind: input, shape index: {}]
  %s1 = inlined_call_operand.vmem [shape: bf16[2,4,8,8], index: 1, kind: input, shape index: {}]
  %s2 = inlined_call_operand.vmem [shape: bf16[2,4,8,8], index: 2, kind: input, shape index: {}]
  %s3 = inlined_call_operand.vmem [shape: bf16[2,4,8,8], index: 3, kind: output, shape index: {}]
  %s4 = sld [smem:[#allocation0]]
  $region53: #{multihead_attention.4} parent=0
    _
  %s6 = ssub.s32 1, %s4
  %s7 = scalar_select 0, %s6, %s4
  loop: start=0, step=1, limit=10
  $region2: #{multihead_attention.4} parent=0 // loop_pre_header
    _
  $region3: #{multihead_attention.4} parent=0 // loop_header
    %s9 = sphi 0, %s13
    %p10 = scmp.ge.s32.totalorder %s9, 10
    %s16 = sphi 0, %s42
    %s17 = sphi 0, %s38
    %s18 = sphi 0, %s34
    %s19 = sphi 0, %s30
    %s20 = sphi 0, %s16
    %s21 = sphi 0, %s17
    %s22 = sphi 0, %s18
    %s23 = sphi 0, %s19
    %s24 = sphi 0, %s20
    %s25 = sphi 0, %s21
    %s26 = sphi 0, %s22
    %s27 = sphi 0, %s23
    %s49 = sphi 0, %s51
    %s52 = sphi 0, %s49
    %s53 = sphi 0, %s52
    %s69 = sphi 0, %s53
    %s79 = sphi 0, %s81
    %s82 = sphi 0, %s79
    %s83 = sphi 0, %s82
    %s99 = sphi 0, %s83
    %s109 = sphi 0, %s111
    %s112 = sphi 0, %s109
    %s113 = sphi 0, %s112
    %s129 = sphi 0, %s113
    %s139 = sphi 0, %s141
    %s142 = sphi 0, %s139
    %s143 = sphi 0, %s142
    %s159 = sphi 0, %s143
  $region4: #{multihead_attention.4} parent=0 // loop_header_branch
    %12 = sbr.rel (%p10) target = $region8
  $region5: #{multihead_attention.4} parent=0 // loop_body
    %s14 = ssub.s32 %s9, 1
    %s15 = ssub.s32 %s9, 2
    %s28 = sadd.s32 1, %s19
    %p29 = scmp.ge.s32.totalorder %s28, 1
    %s30 = scalar_select %p29, 0, %s28
    %s31 = sadd.s32 1, %s18
    %s32 = scalar_select %p29, %s31, %s18
    %p33 = scmp.ge.s32.totalorder %s32, 1
    %s34 = scalar_select %p33, 0, %s32
    %s35 = sadd.s32 1, %s17
    %s36 = scalar_select %p33, %s35, %s17
    %p37 = scmp.ge.s32.totalorder %s36, 4
    %s38 = scalar_select %p37, 0, %s36
    %s39 = sadd.s32 1, %s16
    %s40 = scalar_select %p37, %s39, %s16
    %p41 = scmp.ge.s32.totalorder %s40, 2
    %s42 = scalar_select %p41, 0, %s40
    %s43 = ssub.s32 %s16, %s42
    %s44 = ssub.s32 %s17, %s38
    %s45 = sor.u32 %s43, %s44
    %s46 = ssub.s32 %s18, %s34
    %s47 = sor.u32 %s45, %s46
    %p48 = scmp.eq.s32.totalorder %s47, 0
    %s50 = sadd.s32 %s49, 1
    %s51 = scalar_select %p48, %s49, %s50
    %p54 = pneg %p48
    %p55 = scmp.eq.s32.totalorder %s9, 7
    %p56 = por %p54, %p55
    %p57 = scmp.ne.s32.totalorder %s49, %s52
    %p58 = scmp.eq.s32.totalorder %s9, 0
    %p59 = por %p57, %p58
    %p60 = scmp.ne.s32.totalorder %s49, %s52
    %p61 = scmp.eq.s32.totalorder %s14, 7
    %p62 = por %p60, %p61
    %p63 = scmp.ne.s32.totalorder %s52, %s53
    %p64 = scmp.eq.s32.totalorder %s14, 0
    %p65 = por %p63, %p64
    %p66 = scmp.ne.s32.totalorder %s52, %s53
    %p67 = scmp.eq.s32.totalorder %s15, 7
    %p68 = por %p66, %p67
    %p70 = scmp.ne.s32.totalorder %s53, %s69
    %p71 = scmp.eq.s32.totalorder %s15, 0
    %p72 = por %p70, %p71
    %s73 = ssub.s32 %s16, %s42
    %s74 = ssub.s32 %s17, %s38
    %s75 = sor.u32 %s73, %s74
    %s76 = ssub.s32 %s19, %s30
    %s77 = sor.u32 %s75, %s76
    %p78 = scmp.eq.s32.totalorder %s77, 0
    %s80 = sadd.s32 %s79, 1
    %s81 = scalar_select %p78, %s79, %s80
    %p84 = pneg %p78
    %p85 = scmp.eq.s32.totalorder %s9, 7
    %p86 = por %p84, %p85
    %p87 = scmp.ne.s32.totalorder %s79, %s82
    %p88 = scmp.eq.s32.totalorder %s9, 0
    %p89 = por %p87, %p88
    %p90 = scmp.ne.s32.totalorder %s79, %s82
    %p91 = scmp.eq.s32.totalorder %s14, 7
    %p92 = por %p90, %p91
    %p93 = scmp.ne.s32.totalorder %s82, %s83
    %p94 = scmp.eq.s32.totalorder %s14, 0
    %p95 = por %p93, %p94
    %p96 = scmp.ne.s32.totalorder %s82, %s83
    %p97 = scmp.eq.s32.totalorder %s15, 7
    %p98 = por %p96, %p97
    %p100 = scmp.ne.s32.totalorder %s83, %s99
    %p101 = scmp.eq.s32.totalorder %s15, 0
    %p102 = por %p100, %p101
    %s103 = ssub.s32 %s16, %s42
    %s104 = ssub.s32 %s17, %s38
    %s105 = sor.u32 %s103, %s104
    %s106 = ssub.s32 %s19, %s30
    %s107 = sor.u32 %s105, %s106
    %p108 = scmp.eq.s32.totalorder %s107, 0
    %s110 = sadd.s32 %s109, 1
    %s111 = scalar_select %p108, %s109, %s110
    %p114 = pneg %p108
    %p115 = scmp.eq.s32.totalorder %s9, 7
    %p116 = por %p114, %p115
    %p117 = scmp.ne.s32.totalorder %s109, %s112
    %p118 = scmp.eq.s32.totalorder %s9, 0
    %p119 = por %p117, %p118
    %p120 = scmp.ne.s32.totalorder %s109, %s112
    %p121 = scmp.eq.s32.totalorder %s14, 7
    %p122 = por %p120, %p121
    %p123 = scmp.ne.s32.totalorder %s112, %s113
    %p124 = scmp.eq.s32.totalorder %s14, 0
    %p125 = por %p123, %p124
    %p126 = scmp.ne.s32.totalorder %s112, %s113
    %p127 = scmp.eq.s32.totalorder %s15, 7
    %p128 = por %p126, %p127
    %p130 = scmp.ne.s32.totalorder %s113, %s129
    %p131 = scmp.eq.s32.totalorder %s15, 0
    %p132 = por %p130, %p131
    %s133 = ssub.s32 %s16, %s42
    %s134 = ssub.s32 %s17, %s38
    %s135 = sor.u32 %s133, %s134
    %s136 = ssub.s32 %s18, %s34
    %s137 = sor.u32 %s135, %s136
    %p138 = scmp.eq.s32.totalorder %s137, 0
    %s140 = sadd.s32 %s139, 1
    %s141 = scalar_select %p138, %s139, %s140
    %p144 = pneg %p138
    %p145 = scmp.eq.s32.totalorder %s9, 7
    %p146 = por %p144, %p145
    %p147 = scmp.ne.s32.totalorder %s139, %s142
    %p148 = scmp.eq.s32.totalorder %s9, 0
    %p149 = por %p147, %p148
    %p150 = scmp.ne.s32.totalorder %s139, %s142
    %p151 = scmp.eq.s32.totalorder %s14, 7
    %p152 = por %p150, %p151
    %p153 = scmp.ne.s32.totalorder %s142, %s143
    %p154 = scmp.eq.s32.totalorder %s14, 0
    %p155 = por %p153, %p154
    %p156 = scmp.ne.s32.totalorder %s142, %s143
    %p157 = scmp.eq.s32.totalorder %s15, 7
    %p158 = por %p156, %p157
    %p160 = scmp.ne.s32.totalorder %s143, %s159
    %p161 = scmp.eq.s32.totalorder %s15, 0
    %p162 = por %p160, %p161
    %p163 = scmp.le.s32.totalorder 1, %s9
    %p164 = scmp.lt.s32.totalorder %s9, 9
    %p165 = pnand %p163, %p164
    %p166 = pneg %p165
    // Predicated region
    $region9: #{multihead_attention.4} parent=5 // pred_check
      _
    $region10: #{multihead_attention.4} parent=5 // pred_check_branch
      %168 = sbr.rel (%p165) target = $region12
    $region11: #{multihead_attention.4} parent=5 // pred_region
      %s169 = ssub.s32 %s9, 1
    $region12: #{multihead_attention.4} parent=5 // pred_fallthru
      _
    %p170 = scmp.lt.s32.totalorder %s9, 8
    // Predicated region
    $region13: #{multihead_attention.4} parent=5 // pred_check
      %p171 = pneg %p170
    $region14: #{multihead_attention.4} parent=5 // pred_check_branch
      %173 = sbr.rel (%p171) target = $region16
    $region15: #{multihead_attention.4} parent=5 // pred_region
      // Predicated region
      $region17: #{multihead_attention.4} parent=15 // pred_check
        %p174 = pneg %p59
      $region18: #{multihead_attention.4} parent=15 // pred_check_branch
        %176 = sbr.rel (%p174) target = $region20
      $region19: #{multihead_attention.4} parent=15 // pred_region
        %p177 = scmp.lt.s32.totalorder %s16, 1
        %s178 = scalar_select %p177, %s16, 1
        %p179 = scmp.lt.s32.totalorder %s17, 3
        %s180 = scalar_select %p179, %s17, 3
        %p181 = scmp.lt.s32.totalorder %s18, 0
        %s182 = scalar_select %p181, %s18, 0
        %s183 = sadd.s32 %s182, %s180
        %s184 = smul.addr %s178, 4
        %s185 = sadd.s32 %s183, %s184
        %s186 = smul.addr %s185, 4
        %s187 = scalar_lea.vmem %s0, %s186
      $region20: #{multihead_attention.4} parent=15 // pred_fallthru
        _
      // Predicated region
      $region21: #{multihead_attention.4} parent=15 // pred_check
        %p188 = pneg %p89
      $region22: #{multihead_attention.4} parent=15 // pred_check_branch
        %190 = sbr.rel (%p188) target = $region24
      $region23: #{multihead_attention.4} parent=15 // pred_region
        %p191 = scmp.lt.s32.totalorder %s16, 1
        %s192 = scalar_select %p191, %s16, 1
        %p193 = scmp.lt.s32.totalorder %s17, 3
        %s194 = scalar_select %p193, %s17, 3
        %p195 = scmp.lt.s32.totalorder %s19, 0
        %s196 = scalar_select %p195, %s19, 0
        %s197 = sadd.s32 %s196, %s194
        %s198 = smul.addr %s192, 4
        %s199 = sadd.s32 %s197, %s198
        %s200 = smul.addr %s199, 4
        %s201 = scalar_lea.vmem %s1, %s200
      $region24: #{multihead_attention.4} parent=15 // pred_fallthru
        _
      // Predicated region
      $region25: #{multihead_attention.4} parent=15 // pred_check
        %p202 = pneg %p119
      $region26: #{multihead_attention.4} parent=15 // pred_check_branch
        %204 = sbr.rel (%p202) target = $region28
      $region27: #{multihead_attention.4} parent=15 // pred_region
        %p205 = scmp.lt.s32.totalorder %s16, 1
        %s206 = scalar_select %p205, %s16, 1
        %p207 = scmp.lt.s32.totalorder %s17, 3
        %s208 = scalar_select %p207, %s17, 3
        %p209 = scmp.lt.s32.totalorder %s19, 0
        %s210 = scalar_select %p209, %s19, 0
        %s211 = sadd.s32 %s210, %s208
        %s212 = smul.addr %s206, 4
        %s213 = sadd.s32 %s211, %s212
        %s214 = smul.addr %s213, 4
        %s215 = scalar_lea.vmem %s2, %s214
      $region28: #{multihead_attention.4} parent=15 // pred_fallthru
        _
    $region16: #{multihead_attention.4} parent=5 // pred_fallthru
      _
    %p216 = scmp.le.s32.totalorder 1, %s9
    %p217 = scmp.lt.s32.totalorder %s9, 9
    %p218 = pnand %p216, %p217
    %p219 = pneg %p218
    // Predicated region
    $region29: #{multihead_attention.4} parent=5 // pred_check
      _
    $region30: #{multihead_attention.4} parent=5 // pred_check_branch
      %221 = sbr.rel (%p218) target = $region32
    $region31: #{multihead_attention.4} parent=5 // pred_region
      %s222 = ssub.s32 %s9, 1
      %p223 = scmp.lt.s32.totalorder %s20, 1
      %s224 = scalar_select %p223, %s20, 1
      %p225 = scmp.lt.s32.totalorder %s21, 3
      %s226 = scalar_select %p225, %s21, 3
      %p227 = scmp.lt.s32.totalorder %s22, 0
      %s228 = scalar_select %p227, %s22, 0
      %s229 = sadd.s32 %s228, %s226
      %s230 = smul.addr %s224, 4
      %s231 = sadd.s32 %s229, %s230
      %s232 = smul.addr %s231, 4
      %s233 = scalar_lea.vmem %s0, %s232
      %p234 = pneg %p65
      %p235 = pneg %p62
      %p236 = scmp.lt.s32.totalorder %s20, 1
      %s237 = scalar_select %p236, %s20, 1
      %p238 = scmp.lt.s32.totalorder %s21, 3
      %s239 = scalar_select %p238, %s21, 3
      %p240 = scmp.lt.s32.totalorder %s23, 0
      %s241 = scalar_select %p240, %s23, 0
      %s242 = sadd.s32 %s241, %s239
      %s243 = smul.addr %s237, 4
      %s244 = sadd.s32 %s242, %s243
      %s245 = smul.addr %s244, 4
      %s246 = scalar_lea.vmem %s1, %s245
      %p247 = pneg %p95
      %p248 = pneg %p92
      %p249 = scmp.lt.s32.totalorder %s20, 1
      %s250 = scalar_select %p249, %s20, 1
      %p251 = scmp.lt.s32.totalorder %s21, 3
      %s252 = scalar_select %p251, %s21, 3
      %p253 = scmp.lt.s32.totalorder %s23, 0
      %s254 = scalar_select %p253, %s23, 0
      %s255 = sadd.s32 %s254, %s252
      %s256 = smul.addr %s250, 4
      %s257 = sadd.s32 %s255, %s256
      %s258 = smul.addr %s257, 4
      %s259 = scalar_lea.vmem %s2, %s258
      %p260 = pneg %p125
      %p261 = pneg %p122
      %p262 = pneg %p155
      %p263 = pneg %p152
      %p264 = scmp.lt.s32.totalorder %s20, 1
      %s265 = scalar_select %p264, %s20, 1
      %p266 = scmp.lt.s32.totalorder %s21, 3
      %s267 = scalar_select %p266, %s21, 3
      %p268 = scmp.lt.s32.totalorder %s22, 0
      %s269 = scalar_select %p268, %s22, 0
      %s270 = sadd.s32 %s269, %s267
      %s271 = smul.addr %s265, 4
      %s272 = sadd.s32 %s270, %s271
      %s273 = smul.addr %s272, 4
      %s274 = scalar_lea.vmem %s3, %s273
      %p275 = scmp.lt.s32.totalorder %s20, 1
      %s276 = scalar_select %p275, %s20, 1
      %p277 = scmp.lt.s32.totalorder %s21, 3
      %s278 = scalar_select %p277, %s21, 3
      %p279 = scmp.lt.s32.totalorder %s22, 0
      %s280 = scalar_select %p279, %s22, 0
      %s281 = sadd.s32 %s280, %s278
      %s282 = smul.addr %s276, 4
      %s283 = sadd.s32 %s281, %s282
      %s284 = smul.addr %s283, 4
      %s285 = scalar_lea.vmem %s0, %s284
      %p286 = scmp.lt.s32.totalorder %s20, 1
      %s287 = scalar_select %p286, %s20, 1
      %p288 = scmp.lt.s32.totalorder %s21, 3
      %s289 = scalar_select %p288, %s21, 3
      %p290 = scmp.lt.s32.totalorder %s23, 0
      %s291 = scalar_select %p290, %s23, 0
      %s292 = sadd.s32 %s291, %s289
      %s293 = smul.addr %s287, 4
      %s294 = sadd.s32 %s292, %s293
      %s295 = smul.addr %s294, 4
      %s296 = scalar_lea.vmem %s1, %s295
      %p297 = scmp.lt.s32.totalorder %s20, 1
      %s298 = scalar_select %p297, %s20, 1
      %p299 = scmp.lt.s32.totalorder %s21, 3
      %s300 = scalar_select %p299, %s21, 3
      %p301 = scmp.lt.s32.totalorder %s23, 0
      %s302 = scalar_select %p301, %s23, 0
      %s303 = sadd.s32 %s302, %s300
      %s304 = smul.addr %s298, 4
      %s305 = sadd.s32 %s303, %s304
      %s306 = smul.addr %s305, 4
      %s307 = scalar_lea.vmem %s2, %s306
      %p308 = scmp.lt.s32.totalorder %s20, 1
      %s309 = scalar_select %p308, %s20, 1
      %p310 = scmp.lt.s32.totalorder %s21, 3
      %s311 = scalar_select %p310, %s21, 3
      %p312 = scmp.lt.s32.totalorder %s22, 0
      %s313 = scalar_select %p312, %s22, 0
      %s314 = sadd.s32 %s313, %s311
      %s315 = smul.addr %s309, 4
      %s316 = sadd.s32 %s314, %s315
      %s317 = smul.addr %s316, 4
      %s318 = scalar_lea.vmem %s3, %s317
      %p320 = scmp.eq.s32.totalorder %s23, 0
      // Predicated region
      $region33: #{multihead_attention.4} parent=31 // pred_check
        %p321 = pneg %p320
      $region34: #{multihead_attention.4} parent=31 // pred_check_branch
        %323 = sbr.rel (%p321) target = $region36
      $region35: #{multihead_attention.4} parent=31 // pred_region
        %vm324 = vcmask 7168
        %325 = vst.msk [vmem:[#allocation2] sm:$0xff] %vm324, -inf
        %326 = vst.msk [vmem:[#allocation3] sm:$0xff] %vm324, 0.0
        %vm327 = vcmask 64512
        %328 = vst.msk [vmem:[#allocation4] sm:$0xff] %vm327, 0.0
      $region36: #{multihead_attention.4} parent=31 // pred_fallthru
        _
      %v329 = vld [vmem:[%s285] sm:$0xf]
      %v330 = vld [vmem:[%s296] sm:$0xf]
      %vm331 = vcmask 64512
      %v333 = vsel %vm331, %v329, 0
      %v336 = vsel %vm331, %v330, 0
      %338 = vmatprep.subr.bf16.mxu0 0
      %339 = vmatpush1.bf16.xpose.msra.mxu0 %v336
      %340 = vmatprep.subr.bf16.mxu0 0
      %341 = vmatpush1.bf16.xpose.msra.mxu0 0
      %342 = vmatprep.subr.bf16.mxu0 0
      %343 = vmatpush1.bf16.xpose.msra.mxu0 0
      %344 = vmatprep.subr.bf16.mxu0 0
      %345 = vmatpush1.bf16.xpose.msra.mxu0 0
      %346 = vmatprep.subr.bf16.mxu0 0
      %347 = vmatpush1.bf16.xpose.msra.mxu0 0
      %348 = vmatprep.subr.bf16.mxu0 0
      %349 = vmatpush1.bf16.xpose.msra.mxu0 0
      %350 = vmatprep.subr.bf16.mxu0 0
      %351 = vmatpush1.bf16.xpose.msra.mxu0 0
      %352 = vmatprep.subr.bf16.mxu0 0
      %353 = vmatpush1.bf16.xpose.msra.mxu0 0
      %354 = vmatprep.subr.bf16.mxu0 0
      %355 = vmatpush1.bf16.xpose.msra.mxu0 0
      %356 = vmatprep.subr.bf16.mxu0 0
      %357 = vmatpush1.bf16.xpose.msra.mxu0 0
      %358 = vmatprep.subr.bf16.mxu0 0
      %359 = vmatpush1.bf16.xpose.msra.mxu0 0
      %360 = vmatprep.subr.bf16.mxu0 0
      %361 = vmatpush1.bf16.xpose.msra.mxu0 0
      %362 = vmatprep.subr.bf16.mxu0 0
      %363 = vmatpush1.bf16.xpose.msra.mxu0 0
      %364 = vmatprep.subr.bf16.mxu0 0
      %365 = vmatpush1.bf16.xpose.msra.mxu0 0
      %366 = vmatprep.subr.bf16.mxu0 0
      %367 = vmatpush1.bf16.xpose.msra.mxu0 0
      %368 = vmatprep.subr.bf16.mxu0 0
      %369 = vmatpush1.bf16.xpose.msra.mxu0 0
      %370 = vmatprep.mubr.bf16.mxu0 0
      %371 = vmatmul.mubr.bf16.gmra.mrb[0].mxu0 %v333
      %v372 = vpop.f32.mrb[0].mxu0
      %v373 = vadd.f32 0.0, %v372
      %v374 = vpop.f32.mrb[0].mxu0
      %v375 = vpop.f32.mrb[0].mxu0
      %v376 = vpop.f32.mrb[0].mxu0
      %377 = vdwg.mxu0
      %v378 = vld [vmem:[#allocation2] sm:$0xff]
      %v379 = vsel %vm331, %v373, -inf
      %380 = vmax.xlane.f32.xlu0 %v379
      %v381 = vpop.xlane.xlu0 %380
      %v382 = vmax.f32 %v378, %v381
      %v383 = vsub.f32 %v378, %v382
      %v384 = vmul.f32 %v383, 1.442695
      %v385 = vpow.pop %v384
      %387 = vset.pattern.permute.xlu0 0
      %388 = vperm.xlu0 %387, %v382
      %v389 = vpop.permute.xlu0 %388
      %v391 = vsub.f32 %v373, %v389
      %v392 = vmul.f32 %v391, 1.442695
      %v393 = vpow.pop %v392
      %v394 = vld [vmem:[#allocation3] sm:$0xff]
      %v395 = vmul.f32 %v385, %v394
      %v396 = vsel %vm331, %v393, 0.0
      %397 = vadd.xlane.f32.xlu0 %v396
      %v398 = vpop.xlane.xlu0 %397
      %v399 = vadd.f32 %v395, %v398
      %vm400 = vcmask 7168
      %401 = vst.msk [vmem:[#allocation3] sm:$0xff] %vm400, %v399
      %v402 = vld [vmem:[#allocation4] sm:$0xff]
      %404 = vset.pattern.permute.xlu0 0
      %405 = vperm.xlu0 %404, %v385
      %v406 = vpop.permute.xlu0 %405
      %v408 = vmul.f32 %v406, %v402
      %v409 = vpack.c.bf16 %v393, %v393
      %v410 = vld [vmem:[%s307] sm:$0xf]
      %v412 = vsel %vm331, %v409, 0
      %vm414 = vcmask 1043456
      %v416 = vsel %vm414, %v410, 0
      %418 = vmatprep.subr.bf16.mxu0 0
      %419 = vmatpush1.bf16.msra.mxu0 %v416
      %420 = vmatprep.subr.bf16.mxu0 0
      %421 = vmatpush1.bf16.msra.mxu0 0
      %422 = vmatprep.subr.bf16.mxu0 0
      %423 = vmatpush1.bf16.msra.mxu0 0
      %424 = vmatprep.subr.bf16.mxu0 0
      %425 = vmatpush1.bf16.msra.mxu0 0
      %426 = vmatprep.subr.bf16.mxu0 0
      %427 = vmatpush1.bf16.msra.mxu0 0
      %428 = vmatprep.subr.bf16.mxu0 0
      %429 = vmatpush1.bf16.msra.mxu0 0
      %430 = vmatprep.subr.bf16.mxu0 0
      %431 = vmatpush1.bf16.msra.mxu0 0
      %432 = vmatprep.subr.bf16.mxu0 0
      %433 = vmatpush1.bf16.msra.mxu0 0
      %434 = vmatprep.subr.bf16.mxu0 0
      %435 = vmatpush1.bf16.msra.mxu0 0
      %436 = vmatprep.subr.bf16.mxu0 0
      %437 = vmatpush1.bf16.msra.mxu0 0
      %438 = vmatprep.subr.bf16.mxu0 0
      %439 = vmatpush1.bf16.msra.mxu0 0
      %440 = vmatprep.subr.bf16.mxu0 0
      %441 = vmatpush1.bf16.msra.mxu0 0
      %442 = vmatprep.subr.bf16.mxu0 0
      %443 = vmatpush1.bf16.msra.mxu0 0
      %444 = vmatprep.subr.bf16.mxu0 0
      %445 = vmatpush1.bf16.msra.mxu0 0
      %446 = vmatprep.subr.bf16.mxu0 0
      %447 = vmatpush1.bf16.msra.mxu0 0
      %448 = vmatprep.subr.bf16.mxu0 0
      %449 = vmatpush1.bf16.msra.mxu0 0
      %450 = vmatprep.mubr.bf16.mxu0 0
      %451 = vmatmul.mubr.bf16.gmra.mrb[0].mxu0 %v412
      %v452 = vpop.f32.mrb[0].mxu0
      %v453 = vadd.f32 0.0, %v452
      %v454 = vpop.f32.mrb[0].mxu0
      %v455 = vpop.f32.mrb[0].mxu0
      %v456 = vpop.f32.mrb[0].mxu0
      %457 = vdwg.mxu0
      %v458 = vadd.f32 %v408, %v453
      %459 = vst.msk [vmem:[#allocation4] sm:$0xff] %vm331, %v458
      %460 = vst.msk [vmem:[#allocation2] sm:$0xff] %vm400, %v382
      // Predicated region
      $region37: #{multihead_attention.4} parent=31 // pred_check
        %p461 = pneg %p320
      $region38: #{multihead_attention.4} parent=31 // pred_check_branch
        %463 = sbr.rel (%p461) target = $region40
      $region39: #{multihead_attention.4} parent=31 // pred_region
        %v464 = vld [vmem:[#allocation3] sm:$0xff]
        %v465 = vrcp.pop %v464
        %v466 = vld [vmem:[#allocation4] sm:$0xff]
        %468 = vset.pattern.permute.xlu0 0
        %469 = vperm.xlu0 %468, %v465
        %v470 = vpop.permute.xlu0 %469
        %v472 = vmul.f32 %v466, %v470
        %v473 = vpack.c.bf16 %v472, %v472
        %vm474 = vcmask 60416
        %475 = vst.msk [vmem:[%s318] sm:$0xf] %vm474, %v473
      $region40: #{multihead_attention.4} parent=31 // pred_fallthru
        _
      %p476 = scmp.lt.s32.totalorder %s20, 1
      %s477 = scalar_select %p476, %s20, 1
      %p478 = scmp.lt.s32.totalorder %s21, 3
      %s479 = scalar_select %p478, %s21, 3
      %p480 = scmp.lt.s32.totalorder %s22, 0
      %s481 = scalar_select %p480, %s22, 0
      %s482 = sadd.s32 %s481, %s479
      %s483 = smul.addr %s477, 4
      %s484 = sadd.s32 %s482, %s483
      %s485 = smul.addr %s484, 4
      %s486 = scalar_lea.vmem %s3, %s485
      // Predicated region
      $region41: #{multihead_attention.4} parent=31 // pred_check
        %p487 = pneg %p152
      $region42: #{multihead_attention.4} parent=31 // pred_check_branch
        %489 = sbr.rel (%p487) target = $region44
      $region43: #{multihead_attention.4} parent=31 // pred_region
        _
      $region44: #{multihead_attention.4} parent=31 // pred_fallthru
        _
    $region32: #{multihead_attention.4} parent=5 // pred_fallthru
      _
    %p490 = scmp.le.s32.totalorder 2, %s9
    // Predicated region
    $region45: #{multihead_attention.4} parent=5 // pred_check
      %p491 = pneg %p490
    $region46: #{multihead_attention.4} parent=5 // pred_check_branch
      %493 = sbr.rel (%p491) target = $region48
    $region47: #{multihead_attention.4} parent=5 // pred_region
      %s494 = ssub.s32 %s9, 2
      // Predicated region
      $region49: #{multihead_attention.4} parent=47 // pred_check
        %p495 = pneg %p158
      $region50: #{multihead_attention.4} parent=47 // pred_check_branch
        %497 = sbr.rel (%p495) target = $region52
      $region51: #{multihead_attention.4} parent=47 // pred_region
        %p498 = scmp.lt.s32.totalorder %s24, 1
        %s499 = scalar_select %p498, %s24, 1
        %p500 = scmp.lt.s32.totalorder %s25, 3
        %s501 = scalar_select %p500, %s25, 3
        %p502 = scmp.lt.s32.totalorder %s26, 0
        %s503 = scalar_select %p502, %s26, 0
        %s504 = sadd.s32 %s503, %s501
        %s505 = smul.addr %s499, 4
        %s506 = sadd.s32 %s504, %s505
        %s507 = smul.addr %s506, 4
        %s508 = scalar_lea.vmem %s3, %s507
      $region52: #{multihead_attention.4} parent=47 // pred_fallthru
        _
    $region48: #{multihead_attention.4} parent=5 // pred_fallthru
      _
  $region6: #{multihead_attention.4} parent=0 // loop_footer
    %s13 = sadd.s32 1, %s9
  $region7: #{multihead_attention.4} parent=0 // loop_footer_branch
    %8 = sbr.rel target = $region3
  $region8: #{multihead_attention.4} parent=0 // loop_exit
    _

</llo_original>
